<compile_context>
chip_gen: v5e
topology: v5e:2x2
jax: 0.10.0
libtpu: 0.0.40
codegen_flags: <defaults>
</compile_context>

<pallas_src>
import functools
import math

import jax
import jax.numpy as jnp
from jax import lax
from jax.experimental import pallas as pl
from jax.experimental.pallas import tpu as pltpu

LANE = 128          # TPU lane width; hidden dim padded to this
COORD_LANES = 8     # 3 coords padded to 8 lanes (last dim == full array dim)


def _round_up(a, b):
    return (a + b - 1) // b * b


def _silu(v):
    return v * jax.nn.sigmoid(v)


def _default_num_splits():
    """2 only on v7x (2 TensorCores/chip); 1 on single-TC chips (v5e/v6e)."""
    try:
        kind = jax.devices()[0].device_kind.lower()
    except Exception:
        return 1
    return 2 if ("v7" in kind or "7x" in kind) else 1


def _equiv_update_kernel(
    row_ref, hrow_ref, hcol_ref, ea_ref, diff_ref,
    w1r_ref, w1c_ref, w1e_ref, b1_ref, w2_ref, b2_ref, w3t_ref,
    out_ref,
    *, norm_constant: float, inv_norm_factor: float, n_pad: int,
    scatter_in_kernel: bool,
):
    """One edge tile: coord2diff + coord_mlp (+ optional scatter-add into out_ref)."""
    h_row = hrow_ref[...]          # (T, Hp)
    h_col = hcol_ref[...]          # (T, Hp)
    ea = ea_ref[...]               # (T, 8)  [edge_attr(7), radial(1)]
    diff = diff_ref[...]           # (T, 8)  x[row]-x[col], lanes 3..7 zero

    # coord2diff: radial + normalized difference (exact divide for accuracy).
    radial = jnp.sum(diff * diff, axis=1, keepdims=True)        # (T, 1)
    norm = jnp.sqrt(radial + 1e-8)
    cdiff = diff / (norm + norm_constant)                        # (T, 8)

    # coord_mlp over concat([h[row], h[col], edge_attr, radial]); first Linear
    # pre-split over the concat pieces so no in-kernel concat is needed.  The
    # radial column rides inside ea @ w1e (row edge_feat_nf of w1e = w1_rad).
    z1 = (jnp.dot(h_row, w1r_ref[...], preferred_element_type=jnp.float32)
          + jnp.dot(h_col, w1c_ref[...], preferred_element_type=jnp.float32)
          + jnp.dot(ea, w1e_ref[...], preferred_element_type=jnp.float32)
          + b1_ref[...])
    a1 = _silu(z1)
    z2 = jnp.dot(a1, w2_ref[...], preferred_element_type=jnp.float32) + b2_ref[...]
    a2 = _silu(z2)
    # Final (H, 1) Linear as a lane reduction (keeps an MXU pass free).
    phi = jnp.sum(a2 * w3t_ref[...], axis=1, keepdims=True)      # (T, 1)

    # per-edge update, with 1/normalization_factor folded in at trace time
    trans = cdiff * (phi * inv_norm_factor)                      # (T, 8)

    if scatter_in_kernel:
        # unsorted_segment_sum: per-tile one-hot scatter contracted on the MXU.
        @pl.when(pl.program_id(1) == 0)
        def _init():
            out_ref[...] = jnp.zeros_like(out_ref)

        row = row_ref[...]                                       # (T, 1) int32
        t = trans.shape[0]
        onehot = (lax.broadcasted_iota(jnp.int32, (t, n_pad), 1) == row
                  ).astype(jnp.float32)
        agg = lax.dot_general(onehot, trans, (((0,), (0,)), ((), ())),
                              preferred_element_type=jnp.float32)  # (Np, 8)
        out_ref[...] += agg
    else:
        # v7x large-N path: emit per-edge trans, segment-sum in XLA (O(tile) VMEM).
        out_ref[...] = trans


def equivariant_block_forward(h, x, row, col, edge_attr, params,
                              norm_constant=1.0, normalization_factor=100.0,
                              tile_e=512, num_splits=None,
                              max_scatter_nodes=4096):
    """Pallas-backed EquivariantBlock.forward (masks = None, sin_embedding = None)."""
    N, H = h.shape
    E = row.shape[0]
    EF = edge_attr.shape[1]
    if num_splits is None:
        num_splits = _default_num_splits()

    Hp = _round_up(max(H, LANE), LANE)
    Np = _round_up(N, 8)
    ea_lanes = _round_up(EF + 1, 8)          # edge_attr + radial, sublane-aligned

    # Effective edge tile (don't over-pad tiny edge lists in the demo).
    tile = min(tile_e, max(_round_up(E, 8), 8))
    Ep = _round_up(E, num_splits * tile)
    tiles_per_split = Ep // (num_splits * tile)

    f32 = jnp.float32
    h = h.astype(f32)
    x = x.astype(f32)
    edge_attr = edge_attr.astype(f32)
    row = row.astype(jnp.int32)
    col = col.astype(jnp.int32)

    # Gathers hoisted to XLA (per-edge dynamic row gather has no cheap in-kernel
    # TPU form); everything streamed into the kernel is edge-tiled and dense.
    h_row = jnp.take(h, row, axis=0)
    h_col = jnp.take(h, col, axis=0)
    diff = jnp.take(x, row, axis=0) - jnp.take(x, col, axis=0)    # (E, 3)
    radial = jnp.sum(diff * diff, axis=1, keepdims=True)          # (E, 1)
    ea_full = jnp.concatenate([edge_attr, radial], axis=1)        # (E, EF+1)

    def pad2(a, r, c):
        return jnp.pad(a, ((0, r - a.shape[0]), (0, c - a.shape[1])))

    h_row_p = pad2(h_row, Ep, Hp)
    h_col_p = pad2(h_col, Ep, Hp)
    ea_p = pad2(ea_full, Ep, ea_lanes)
    diff_p = pad2(diff, Ep, COORD_LANES)
    # padded edges scatter to index Np (out of iota range -> all-zero one-hot row)
    row_p = jnp.pad(row, (0, Ep - E), constant_values=Np).reshape(Ep, 1)

    p = {k: v.astype(f32) for k, v in params.items()}
    w1r = pad2(p["w1h_row"], Hp, Hp)
    w1c = pad2(p["w1h_col"], Hp, Hp)
    # radial weight folded in as row EF of the edge_attr weight slab
    w1e = pad2(jnp.concatenate([p["w1_ea"], p["w1_rad"]], axis=0), ea_lanes, Hp)
    b1 = pad2(p["b1"], 1, Hp)
    w2 = pad2(p["w2"], Hp, Hp)
    b2 = pad2(p["b2"], 1, Hp)
    w3t = pad2(p["w3"].T, 1, Hp)

    # Large node counts would blow VMEM with the resident (Np, 8) accumulator +
    # (tile, Np) one-hot on v7x (64 MiB); fall back to XLA segment-sum there.
    scatter_in_kernel = Np <= max_scatter_nodes

    kernel = functools.partial(
        _equiv_update_kernel,
        norm_constant=float(norm_constant),
        inv_norm_factor=1.0 / float(normalization_factor),
        n_pad=Np,
        scatter_in_kernel=scatter_in_kernel,
    )

    def edge_spec(cols):
        return pl.BlockSpec((tile, cols),
                            lambda c, i: (c * tiles_per_split + i, 0))

    def const_spec(shape):
        # NOTE: weights never re-fetch (constant index map); pipeline_mode=
        # pl.Buffered(1) would halve their resident VMEM but is skipped here
        # for maximum compile safety (they total < 0.5 MiB at Hp=128).
        return pl.BlockSpec(shape, lambda c, i: (0, 0))

    in_specs = [
        edge_spec(1),                # row indices
        edge_spec(Hp),               # h[row]
        edge_spec(Hp),               # h[col]
        edge_spec(ea_lanes),         # edge_attr + radial (8-lane slab)
        edge_spec(COORD_LANES),      # raw coord diff (8-lane slab)
        const_spec((Hp, Hp)),        # w1 (h[row] slice)
        const_spec((Hp, Hp)),        # w1 (h[col] slice)
        const_spec((ea_lanes, Hp)),  # w1 (edge_attr + radial slice)
        const_spec((1, Hp)),         # b1
        const_spec((Hp, Hp)),        # w2
        const_spec((1, Hp)),         # b2
        const_spec((1, Hp)),         # w3^T
    ]

    if scatter_in_kernel:
        out_shape = jax.ShapeDtypeStruct((num_splits, Np, COORD_LANES), f32)
        out_specs = pl.BlockSpec((None, Np, COORD_LANES), lambda c, i: (c, 0, 0))
    else:
        out_shape = jax.ShapeDtypeStruct((Ep, COORD_LANES), f32)
        out_specs = pl.BlockSpec((tile, COORD_LANES),
                                 lambda c, i: (c * tiles_per_split + i, 0))

    out = pl.pallas_call(
        kernel,
        out_shape=out_shape,
        grid=(num_splits, tiles_per_split),
        in_specs=in_specs,
        out_specs=out_specs,
        compiler_params=pltpu.CompilerParams(
            dimension_semantics=("parallel", "arbitrary"),
            vmem_limit_bytes=32 * 1024 * 1024,   # safe on v5e/v6e (128 MiB) and v7x (64 MiB)
        ),
    )(row_p, h_row_p, h_col_p, ea_p, diff_p, w1r, w1c, w1e, b1, w2, b2, w3t)

    if scatter_in_kernel:
        slab = out[0] if num_splits == 1 else jnp.sum(out, axis=0)
        agg = slab[:N, :3]
    else:
        trans = out[:E, :3]                       # 1/normalization_factor already folded in
        agg = jnp.zeros((N, 3), f32).at[row].add(trans)

    x_out = x + agg
    h_out = h  # TODO(synk): GAT ('gasp_%d') layers not translatable; h unchanged.
    return h_out, x_out


def init_params(key, hidden_dim, edge_feat_nf=7):
    """Deterministic synthetic weights for EquivariantUpdate.coord_mlp.

    edges_in_d = edge_feat_nf + 1 (edge_attr concatenated with distances).
    Linear weights stored as (in, out); the first Linear is split over the
    concat pieces [h[row] (H), h[col] (H), edge_attr (7), radial (1)].
    """
    in1 = 2 * hidden_dim + edge_feat_nf + 1
    ks = jax.random.split(key, 8)

    def u(k, shape, bound):
        return jax.random.uniform(k, shape, jnp.float32, -bound, bound)

    b1 = 1.0 / math.sqrt(in1)
    b2 = 1.0 / math.sqrt(hidden_dim)
    b3 = 0.001 * math.sqrt(6.0 / (hidden_dim + 1))   # xavier_uniform, gain=0.001

    return dict(
        w1h_row=u(ks[0], (hidden_dim, hidden_dim), b1),
        w1h_col=u(ks[1], (hidden_dim, hidden_dim), b1),
        w1_ea=u(ks[2], (edge_feat_nf, hidden_dim), b1),
        w1_rad=u(ks[3], (1, hidden_dim), b1),
        b1=u(ks[4], (1, hidden_dim), b1),
        w2=u(ks[5], (hidden_dim, hidden_dim), b2),
        b2=u(ks[6], (1, hidden_dim), b2),
        w3=u(ks[7], (hidden_dim, 1), b3),
    )


def reference_forward(h, x, row, col, edge_attr, params,
                      norm_constant=1.0, normalization_factor=100.0):
    """Pure-JAX reference mirroring the PyTorch semantics (masks = None)."""
    coord_diff = x[row] - x[col]
    radial = jnp.sum(coord_diff ** 2, axis=1, keepdims=True)
    norm = jnp.sqrt(radial + 1e-8)
    coord_diff = coord_diff / (norm + norm_constant)
    ea_full = jnp.concatenate([edge_attr, radial], axis=-1)

    w1 = jnp.concatenate(
        [params["w1h_row"], params["w1h_col"], params["w1_ea"], params["w1_rad"]], axis=0)
    inp = jnp.concatenate([h[row], h[col], ea_full], axis=1)
    a1 = jax.nn.silu(inp @ w1 + params["b1"])
    a2 = jax.nn.silu(a1 @ params["w2"] + params["b2"])
    phi = a2 @ params["w3"]
    trans = coord_diff * phi
    agg = jnp.zeros((h.shape[0], 3), jnp.float32).at[row].add(trans) / normalization_factor
    return h, x + agg


if __name__ == "__main__":
    N, H, EF = 8, 32, 7   # nodes, hidden_dim, edge_feat_nf

    key = jax.random.PRNGKey(0)
    k_h, k_x, k_ea, k_p = jax.random.split(key, 4)

    # fully-connected edge list without self loops
    ii, jj = jnp.meshgrid(jnp.arange(N), jnp.arange(N), indexing="ij")
    mask = ii != jj
    row = ii[mask].astype(jnp.int32)   # (E,)
    col = jj[mask].astype(jnp.int32)   # (E,)
    E = int(row.shape[0])

    h = jax.random.normal(k_h, (N, H), jnp.float32)
    x = jax.random.normal(k_x, (N, 3), jnp.float32)
    edge_attr = jax.random.normal(k_ea, (E, EF), jnp.float32)
    params = init_params(k_p, H, EF)

    h_ref, x_ref = reference_forward(h, x, row, col, edge_attr, params)

    # Main path: in-kernel one-hot scatter (N small enough).
    h_out, x_out = equivariant_block_forward(h, x, row, col, edge_attr, params)
    jax.block_until_ready((h_out, x_out))
    assert jnp.allclose(h_out, h_ref, atol=1e-4, rtol=1e-4)
    assert jnp.allclose(x_out, x_ref, atol=1e-4, rtol=1e-4)

    # Large-N fallback path (per-edge trans + XLA segment-sum), exercised for coverage.
    h_out2, x_out2 = equivariant_block_forward(
        h, x, row, col, edge_attr, params, max_scatter_nodes=0)
    jax.block_until_ready((h_out2, x_out2))
    assert jnp.allclose(h_out2, h_ref, atol=1e-4, rtol=1e-4)
    assert jnp.allclose(x_out2, x_ref, atol=1e-4, rtol=1e-4)

    print("KERNEL_OK")
</pallas_src>

<mosaic_0001>
module attributes {stable_mosaic.version = 11 : i64} {
  func.func @_equiv_update_kernel(%arg0: i32, %arg1: i32, %arg2: memref<56x1xi32, #tpu.memory_space<vmem>>, %arg3: memref<56x128xf32, #tpu.memory_space<vmem>>, %arg4: memref<56x128xf32, #tpu.memory_space<vmem>>, %arg5: memref<56x8xf32, #tpu.memory_space<vmem>>, %arg6: memref<56x8xf32, #tpu.memory_space<vmem>>, %arg7: memref<128x128xf32, #tpu.memory_space<vmem>>, %arg8: memref<128x128xf32, #tpu.memory_space<vmem>>, %arg9: memref<8x128xf32, #tpu.memory_space<vmem>>, %arg10: memref<1x128xf32, #tpu.memory_space<vmem>>, %arg11: memref<128x128xf32, #tpu.memory_space<vmem>>, %arg12: memref<1x128xf32, #tpu.memory_space<vmem>>, %arg13: memref<1x128xf32, #tpu.memory_space<vmem>>, %arg14: memref<1x8x8xf32, #tpu.memory_space<vmem>>) attributes {dimension_semantics = [#tpu.dimension_semantics<parallel>, #tpu.dimension_semantics<arbitrary>], iteration_bounds = array<i64: 1, 1>, scalar_prefetch = 0 : i64, scratch_operands = 0 : i64, tpu.core_type = #tpu.core_type<tc>, window_params = [{transform_indices = @transform_0, window_bounds = array<i64: 56, 1>}, {transform_indices = @transform_1, window_bounds = array<i64: 56, 128>}, {transform_indices = @transform_2, window_bounds = array<i64: 56, 128>}, {transform_indices = @transform_3, window_bounds = array<i64: 56, 8>}, {transform_indices = @transform_4, window_bounds = array<i64: 56, 8>}, {pipeline_mode = #tpu.pipeline_mode<synchronous>, transform_indices = @transform_5, window_bounds = array<i64: 128, 128>}, {pipeline_mode = #tpu.pipeline_mode<synchronous>, transform_indices = @transform_6, window_bounds = array<i64: 128, 128>}, {pipeline_mode = #tpu.pipeline_mode<synchronous>, transform_indices = @transform_7, window_bounds = array<i64: 8, 128>}, {pipeline_mode = #tpu.pipeline_mode<synchronous>, transform_indices = @transform_8, window_bounds = array<i64: 1, 128>}, {pipeline_mode = #tpu.pipeline_mode<synchronous>, transform_indices = @transform_9, window_bounds = array<i64: 128, 128>}, {pipeline_mode = #tpu.pipeline_mode<synchronous>, transform_indices = @transform_10, window_bounds = array<i64: 1, 128>}, {pipeline_mode = #tpu.pipeline_mode<synchronous>, transform_indices = @transform_11, window_bounds = array<i64: 1, 128>}, {transform_indices = @transform_12, window_bounds = array<i64: 1, 8, 8>}]} {
    %c0 = arith.constant 0 : index
    %c0_0 = arith.constant 0 : index
    %0 = vector.load %arg3[%c0, %c0_0] : memref<56x128xf32, #tpu.memory_space<vmem>>, vector<56x128xf32>
    %c0_1 = arith.constant 0 : index
    %c0_2 = arith.constant 0 : index
    %1 = vector.load %arg4[%c0_1, %c0_2] : memref<56x128xf32, #tpu.memory_space<vmem>>, vector<56x128xf32>
    %c0_3 = arith.constant 0 : index
    %c0_4 = arith.constant 0 : index
    %2 = vector.load %arg5[%c0_3, %c0_4] : memref<56x8xf32, #tpu.memory_space<vmem>>, vector<56x8xf32>
    %c0_5 = arith.constant 0 : index
    %c0_6 = arith.constant 0 : index
    %3 = vector.load %arg6[%c0_5, %c0_6] : memref<56x8xf32, #tpu.memory_space<vmem>>, vector<56x8xf32>
    %4 = arith.mulf %3, %3 : vector<56x8xf32>
    %cst = arith.constant dense<0.000000e+00> : vector<56xf32>
    %5 = vector.multi_reduction <add>, %4, %cst [1] : vector<56x8xf32> to vector<56xf32>
    %6 = vector.shape_cast %5 : vector<56xf32> to vector<56x1xf32>
    %cst_7 = arith.constant 9.99999993E-9 : f32
    %7 = vector.broadcast %cst_7 : f32 to vector<56x1xf32>
    %8 = arith.addf %6, %7 : vector<56x1xf32>
    %9 = math.sqrt %8 : vector<56x1xf32>
    %cst_8 = arith.constant 1.000000e+00 : f32
    %10 = vector.broadcast %cst_8 : f32 to vector<56x1xf32>
    %11 = arith.addf %9, %10 : vector<56x1xf32>
    %12 = vector.broadcast %11 : vector<56x1xf32> to vector<56x8xf32>
    %13 = arith.divf %3, %12 : vector<56x8xf32>
    %c0_9 = arith.constant 0 : index
    %c0_10 = arith.constant 0 : index
    %14 = vector.load %arg7[%c0_9, %c0_10] : memref<128x128xf32, #tpu.memory_space<vmem>>, vector<128x128xf32>
    %cst_11 = arith.constant dense<0.000000e+00> : vector<56x128xf32>
    %15 = tpu.matmul %0, %14, %cst_11 {dimension_numbers = #tpu.dot_dimension_numbers<[1], [0], [0], [1], [0, 0, 1, 1], [], []>} : vector<56x128xf32>, vector<128x128xf32>, vector<56x128xf32> -> vector<56x128xf32>
    %c0_12 = arith.constant 0 : index
    %c0_13 = arith.constant 0 : index
    %16 = vector.load %arg8[%c0_12, %c0_13] : memref<128x128xf32, #tpu.memory_space<vmem>>, vector<128x128xf32>
    %cst_14 = arith.constant dense<0.000000e+00> : vector<56x128xf32>
    %17 = tpu.matmul %1, %16, %cst_14 {dimension_numbers = #tpu.dot_dimension_numbers<[1], [0], [0], [1], [0, 0, 1, 1], [], []>} : vector<56x128xf32>, vector<128x128xf32>, vector<56x128xf32> -> vector<56x128xf32>
    %18 = arith.addf %15, %17 : vector<56x128xf32>
    %c0_15 = arith.constant 0 : index
    %c0_16 = arith.constant 0 : index
    %19 = vector.load %arg9[%c0_15, %c0_16] : memref<8x128xf32, #tpu.memory_space<vmem>>, vector<8x128xf32>
    %cst_17 = arith.constant dense<0.000000e+00> : vector<56x128xf32>
    %20 = tpu.matmul %2, %19, %cst_17 {dimension_numbers = #tpu.dot_dimension_numbers<[1], [0], [0], [1], [0, 0, 1, 1], [], []>} : vector<56x8xf32>, vector<8x128xf32>, vector<56x128xf32> -> vector<56x128xf32>
    %21 = arith.addf %18, %20 : vector<56x128xf32>
    %c0_18 = arith.constant 0 : index
    %c0_19 = arith.constant 0 : index
    %22 = vector.load %arg10[%c0_18, %c0_19] : memref<1x128xf32, #tpu.memory_space<vmem>>, vector<1x128xf32>
    %23 = vector.broadcast %22 : vector<1x128xf32> to vector<56x128xf32>
    %24 = arith.addf %21, %23 : vector<56x128xf32>
    %25 = arith.negf %24 : vector<56x128xf32>
    %26 = math.exp %25 : vector<56x128xf32>
    %cst_20 = arith.constant 1.000000e+00 : f32
    %27 = vector.broadcast %cst_20 : f32 to vector<56x128xf32>
    %28 = arith.addf %27, %26 : vector<56x128xf32>
    %29 = arith.divf %27, %28 : vector<56x128xf32>
    %30 = arith.mulf %24, %29 : vector<56x128xf32>
    %c0_21 = arith.constant 0 : index
    %c0_22 = arith.constant 0 : index
    %31 = vector.load %arg11[%c0_21, %c0_22] : memref<128x128xf32, #tpu.memory_space<vmem>>, vector<128x128xf32>
    %cst_23 = arith.constant dense<0.000000e+00> : vector<56x128xf32>
    %32 = tpu.matmul %30, %31, %cst_23 {dimension_numbers = #tpu.dot_dimension_numbers<[1], [0], [0], [1], [0, 0, 1, 1], [], []>} : vector<56x128xf32>, vector<128x128xf32>, vector<56x128xf32> -> vector<56x128xf32>
    %c0_24 = arith.constant 0 : index
    %c0_25 = arith.constant 0 : index
    %33 = vector.load %arg12[%c0_24, %c0_25] : memref<1x128xf32, #tpu.memory_space<vmem>>, vector<1x128xf32>
    %34 = vector.broadcast %33 : vector<1x128xf32> to vector<56x128xf32>
    %35 = arith.addf %32, %34 : vector<56x128xf32>
    %36 = arith.negf %35 : vector<56x128xf32>
    %37 = math.exp %36 : vector<56x128xf32>
    %cst_26 = arith.constant 1.000000e+00 : f32
    %38 = vector.broadcast %cst_26 : f32 to vector<56x128xf32>
    %39 = arith.addf %38, %37 : vector<56x128xf32>
    %40 = arith.divf %38, %39 : vector<56x128xf32>
    %41 = arith.mulf %35, %40 : vector<56x128xf32>
    %c0_27 = arith.constant 0 : index
    %c0_28 = arith.constant 0 : index
    %42 = vector.load %arg13[%c0_27, %c0_28] : memref<1x128xf32, #tpu.memory_space<vmem>>, vector<1x128xf32>
    %43 = vector.broadcast %42 : vector<1x128xf32> to vector<56x128xf32>
    %44 = arith.mulf %41, %43 : vector<56x128xf32>
    %cst_29 = arith.constant dense<0.000000e+00> : vector<56xf32>
    %45 = vector.multi_reduction <add>, %44, %cst_29 [1] : vector<56x128xf32> to vector<56xf32>
    %46 = vector.shape_cast %45 : vector<56xf32> to vector<56x1xf32>
    %cst_30 = arith.constant 0.00999999977 : f32
    %47 = vector.broadcast %cst_30 : f32 to vector<56x1xf32>
    %48 = arith.mulf %46, %47 : vector<56x1xf32>
    %49 = vector.broadcast %48 : vector<56x1xf32> to vector<56x8xf32>
    %50 = arith.mulf %13, %49 : vector<56x8xf32>
    %c0_i32 = arith.constant 0 : i32
    %51 = arith.cmpi eq, %arg1, %c0_i32 : i32
    %52 = arith.extui %51 : i1 to i32
    %c0_i32_31 = arith.constant 0 : i32
    %53 = arith.cmpi ne, %52, %c0_i32_31 : i32
    scf.if %53 {
      %cst_41 = arith.constant 0.000000e+00 : f32
      %67 = vector.broadcast %cst_41 : f32 to vector<8x8xf32>
      %c0_42 = arith.constant 0 : index
      %c0_43 = arith.constant 0 : index
      %c0_44 = arith.constant 0 : index
      %68 = vector.load %arg14[%c0_42, %c0_43, %c0_44] : memref<1x8x8xf32, #tpu.memory_space<vmem>>, vector<1x8x8xf32>
      %69 = vector.shape_cast %68 : vector<1x8x8xf32> to vector<8x8xf32>
      %70 = vector.shape_cast %67 : vector<8x8xf32> to vector<1x8x8xf32>
      tpu.vector_store %arg14[%c0_42, %c0_43, %c0_44], %70 {strides = array<i32>} : memref<1x8x8xf32, #tpu.memory_space<vmem>>, vector<1x8x8xf32>,
    } else {
    }
    %c0_32 = arith.constant 0 : index
    %c0_33 = arith.constant 0 : index
    %54 = vector.load %arg2[%c0_32, %c0_33] : memref<56x1xi32, #tpu.memory_space<vmem>>, vector<56x1xi32>
    %55 = tpu.iota {dimensions = array<i32: 1>} : vector<56x8xi32>
    %56 = vector.broadcast %54 : vector<56x1xi32> to vector<56x8xi32>
    %57 = arith.cmpi eq, %55, %56 : vector<56x8xi32>
    %58 = arith.extui %57 : vector<56x8xi1> to vector<56x8xi32>
    %59 = arith.sitofp %58 : vector<56x8xi32> to vector<56x8xf32>
    %cst_34 = arith.constant dense<0.000000e+00> : vector<8x8xf32>
    %60 = tpu.matmul %59, %50, %cst_34 {dimension_numbers = #tpu.dot_dimension_numbers<[0], [0], [1], [1], [0, 1, 1, 1], [], []>} : vector<56x8xf32>, vector<56x8xf32>, vector<8x8xf32> -> vector<8x8xf32>
    %c0_35 = arith.constant 0 : index
    %c0_36 = arith.constant 0 : index
    %c0_37 = arith.constant 0 : index
    %61 = vector.load %arg14[%c0_35, %c0_36, %c0_37] : memref<1x8x8xf32, #tpu.memory_space<vmem>>, vector<1x8x8xf32>
    %62 = vector.shape_cast %61 : vector<1x8x8xf32> to vector<8x8xf32>
    %63 = arith.addf %62, %60 : vector<8x8xf32>
    %c0_38 = arith.constant 0 : index
    %c0_39 = arith.constant 0 : index
    %c0_40 = arith.constant 0 : index
    %64 = vector.load %arg14[%c0_38, %c0_39, %c0_40] : memref<1x8x8xf32, #tpu.memory_space<vmem>>, vector<1x8x8xf32>
    %65 = vector.shape_cast %64 : vector<1x8x8xf32> to vector<8x8xf32>
    %66 = vector.shape_cast %63 : vector<8x8xf32> to vector<1x8x8xf32>
    tpu.vector_store %arg14[%c0_38, %c0_39, %c0_40], %66 {strides = array<i32>} : memref<1x8x8xf32, #tpu.memory_space<vmem>>, vector<1x8x8xf32>,
    return
  }
  func.func @transform_0(%arg0: i32, %arg1: i32) -> (i32, i32) {
    %c1_i32 = arith.constant 1 : i32
    %0 = arith.muli %arg0, %c1_i32 : i32
    %1 = arith.addi %0, %arg1 : i32
    %c0_i32 = arith.constant 0 : i32
    %c0_i32_0 = arith.constant 0 : i32
    return %1, %c0_i32 : i32, i32
  }
  func.func @transform_1(%arg0: i32, %arg1: i32) -> (i32, i32) {
    %c1_i32 = arith.constant 1 : i32
    %0 = arith.muli %arg0, %c1_i32 : i32
    %1 = arith.addi %0, %arg1 : i32
    %c0_i32 = arith.constant 0 : i32
    %c0_i32_0 = arith.constant 0 : i32
    return %1, %c0_i32 : i32, i32
  }
  func.func @transform_2(%arg0: i32, %arg1: i32) -> (i32, i32) {
    %c1_i32 = arith.constant 1 : i32
    %0 = arith.muli %arg0, %c1_i32 : i32
    %1 = arith.addi %0, %arg1 : i32
    %c0_i32 = arith.constant 0 : i32
    %c0_i32_0 = arith.constant 0 : i32
    return %1, %c0_i32 : i32, i32
  }
  func.func @transform_3(%arg0: i32, %arg1: i32) -> (i32, i32) {
    %c1_i32 = arith.constant 1 : i32
    %0 = arith.muli %arg0, %c1_i32 : i32
    %1 = arith.addi %0, %arg1 : i32
    %c0_i32 = arith.constant 0 : i32
    %c0_i32_0 = arith.constant 0 : i32
    return %1, %c0_i32 : i32, i32
  }
  func.func @transform_4(%arg0: i32, %arg1: i32) -> (i32, i32) {
    %c1_i32 = arith.constant 1 : i32
    %0 = arith.muli %arg0, %c1_i32 : i32
    %1 = arith.addi %0, %arg1 : i32
    %c0_i32 = arith.constant 0 : i32
    %c0_i32_0 = arith.constant 0 : i32
    return %1, %c0_i32 : i32, i32
  }
  func.func @transform_5(%arg0: i32, %arg1: i32) -> (i32, i32) {
    %c0_i32 = arith.constant 0 : i32
    %c0_i32_0 = arith.constant 0 : i32
    %c0_i32_1 = arith.constant 0 : i32
    return %c0_i32, %c0_i32_0 : i32, i32
  }
  func.func @transform_6(%arg0: i32, %arg1: i32) -> (i32, i32) {
    %c0_i32 = arith.constant 0 : i32
    %c0_i32_0 = arith.constant 0 : i32
    %c0_i32_1 = arith.constant 0 : i32
    return %c0_i32, %c0_i32_0 : i32, i32
  }
  func.func @transform_7(%arg0: i32, %arg1: i32) -> (i32, i32) {
    %c0_i32 = arith.constant 0 : i32
    %c0_i32_0 = arith.constant 0 : i32
    %c0_i32_1 = arith.constant 0 : i32
    return %c0_i32, %c0_i32_0 : i32, i32
  }
  func.func @transform_8(%arg0: i32, %arg1: i32) -> (i32, i32) {
    %c0_i32 = arith.constant 0 : i32
    %c0_i32_0 = arith.constant 0 : i32
    %c0_i32_1 = arith.constant 0 : i32
    return %c0_i32, %c0_i32_0 : i32, i32
  }
  func.func @transform_9(%arg0: i32, %arg1: i32) -> (i32, i32) {
    %c0_i32 = arith.constant 0 : i32
    %c0_i32_0 = arith.constant 0 : i32
    %c0_i32_1 = arith.constant 0 : i32
    return %c0_i32, %c0_i32_0 : i32, i32
  }
  func.func @transform_10(%arg0: i32, %arg1: i32) -> (i32, i32) {
    %c0_i32 = arith.constant 0 : i32
    %c0_i32_0 = arith.constant 0 : i32
    %c0_i32_1 = arith.constant 0 : i32
    return %c0_i32, %c0_i32_0 : i32, i32
  }
  func.func @transform_11(%arg0: i32, %arg1: i32) -> (i32, i32) {
    %c0_i32 = arith.constant 0 : i32
    %c0_i32_0 = arith.constant 0 : i32
    %c0_i32_1 = arith.constant 0 : i32
    return %c0_i32, %c0_i32_0 : i32, i32
  }
  func.func @transform_12(%arg0: i32, %arg1: i32) -> (i32, i32, i32) {
    %c0_i32 = arith.constant 0 : i32
    %c0_i32_0 = arith.constant 0 : i32
    %c0_i32_1 = arith.constant 0 : i32
    return %arg0, %c0_i32, %c0_i32_0 : i32, i32, i32
  }
}

</mosaic_0001>

<llo_original>
// kernel: tpu_custom_call.1
$region0: #{tpu_custom_call.1}
  #allocation0 [shape = 'u32[]', space=smem, size = 0x4, offset = 0x4, fixed_abs, tag = 'smem constant byte address 0x4 - core index']
  #allocation1 [shape = 'u32[72,128]{1,0:T(1,128)}', space=vmem, size = 0x9000, scoped, tag = 'internal scratch']
  %s0 = inlined_call_operand.vmem [shape: s32[56,1], index: 0, kind: input, shape index: {}]
  %s1 = inlined_call_operand.vmem [shape: f32[56,128], index: 1, kind: input, shape index: {}]
  %s2 = inlined_call_operand.vmem [shape: f32[56,128], index: 2, kind: input, shape index: {}]
  %s3 = inlined_call_operand.vmem [shape: f32[56,8], index: 3, kind: input, shape index: {}]
  %s4 = inlined_call_operand.vmem [shape: f32[56,8], index: 4, kind: input, shape index: {}]
  %s5 = inlined_call_operand.hbm [shape: f32[128,128], index: 5, kind: input, shape index: {}]
  %s6 = inlined_call_operand.hbm [shape: f32[128,128], index: 6, kind: input, shape index: {}]
  %s7 = inlined_call_operand.vmem [shape: f32[8,128], index: 7, kind: input, shape index: {}]
  %s8 = inlined_call_operand.vmem [shape: f32[1,128], index: 8, kind: input, shape index: {}]
  %s9 = inlined_call_operand.hbm [shape: f32[128,128], index: 9, kind: input, shape index: {}]
  %s10 = inlined_call_operand.vmem [shape: f32[1,128], index: 10, kind: input, shape index: {}]
  %s11 = inlined_call_operand.vmem [shape: f32[1,128], index: 11, kind: input, shape index: {}]
  %s12 = inlined_call_operand.hbm [shape: f32[1,8,8], index: 12, kind: output, shape index: {}]
  %s13 = sld [smem:[#allocation0]]
  $region74: #{tpu_custom_call.1} parent=0
    _
  %s15 = ssub.s32 1, %s13
  %s16 = scalar_select 0, %s15, %s13
  $region1: #{tpu_custom_call.1} parent=0
    #allocation2 [shape = 'u8[65536]{0}', space=vmem, size = 0x10000, scoped, tag = 'input window, operand 5, single buffered']
    #allocation3 [shape = 's32[1]{0}', space=sflag, size = 0x4, scoped, tag = 'scoped memory for tpu_custom_call.1']
    #allocation4 [shape = 's32[1]{0}', space=sflag, size = 0x4, scoped, tag = 'scoped memory for tpu_custom_call.1']
    #allocation5 [shape = 'u8[65536]{0}', space=vmem, size = 0x10000, scoped, tag = 'input window, operand 6, single buffered']
    #allocation6 [shape = 's32[1]{0}', space=sflag, size = 0x4, scoped, tag = 'scoped memory for tpu_custom_call.1']
    #allocation7 [shape = 'u8[65536]{0}', space=vmem, size = 0x10000, scoped, tag = 'input window, operand 9, single buffered']
    #allocation8 [shape = 'u8[4096]{0}', space=vmem, size = 0x1000, scoped, tag = 'output window, operand 0, single buffered']
    %17 = vsyncpa [#allocation3], 0
    %18 = vsyncpa [#allocation6], 0
    %19 = vsyncpa [#allocation4], 0
    // Predicated region
    $region2: #{tpu_custom_call.1} parent=1 // pred_check
      _
    $region3: #{tpu_custom_call.1} parent=1 // pred_check_branch
      %21 = sbr.rel (0) target = $region5
    $region4: #{tpu_custom_call.1} parent=1 // pred_region
      %s22 = sadd.s32 0, 0
      %s23 = smul.u32 7, %s22
      %p24 = scmp.lt.s32.totalorder %s23, 6
      %s25 = scalar_select %p24, %s23, 6
      %s26 = smul.addr %s25, 8
      %s27 = scalar_lea.vmem %s0, %s26
      %s28 = sadd.s32 0, 0
      %s29 = smul.u32 7, %s28
    $region5: #{tpu_custom_call.1} parent=1 // pred_fallthru
      _
    // Predicated region
    $region6: #{tpu_custom_call.1} parent=1 // pred_check
      _
    $region7: #{tpu_custom_call.1} parent=1 // pred_check_branch
      %31 = sbr.rel (0) target = $region9
    $region8: #{tpu_custom_call.1} parent=1 // pred_region
      %s32 = sadd.s32 0, 0
      %s33 = smul.u32 7, %s32
      %p34 = scmp.lt.s32.totalorder %s33, 6
      %s35 = scalar_select %p34, %s33, 6
      %s36 = smul.addr %s35, 8
      %s37 = scalar_lea.vmem %s1, %s36
      %s38 = sadd.s32 0, 0
      %s39 = smul.u32 7, %s38
    $region9: #{tpu_custom_call.1} parent=1 // pred_fallthru
      _
    // Predicated region
    $region10: #{tpu_custom_call.1} parent=1 // pred_check
      _
    $region11: #{tpu_custom_call.1} parent=1 // pred_check_branch
      %41 = sbr.rel (0) target = $region13
    $region12: #{tpu_custom_call.1} parent=1 // pred_region
      %s42 = sadd.s32 0, 0
      %s43 = smul.u32 7, %s42
      %p44 = scmp.lt.s32.totalorder %s43, 6
      %s45 = scalar_select %p44, %s43, 6
      %s46 = smul.addr %s45, 8
      %s47 = scalar_lea.vmem %s2, %s46
      %s48 = sadd.s32 0, 0
      %s49 = smul.u32 7, %s48
    $region13: #{tpu_custom_call.1} parent=1 // pred_fallthru
      _
    // Predicated region
    $region14: #{tpu_custom_call.1} parent=1 // pred_check
      _
    $region15: #{tpu_custom_call.1} parent=1 // pred_check_branch
      %51 = sbr.rel (0) target = $region17
    $region16: #{tpu_custom_call.1} parent=1 // pred_region
      %s52 = sadd.s32 0, 0
      %s53 = smul.u32 7, %s52
      %p54 = scmp.lt.s32.totalorder %s53, 6
      %s55 = scalar_select %p54, %s53, 6
      %s56 = smul.addr %s55, 8
      %s57 = scalar_lea.vmem %s3, %s56
      %s58 = sadd.s32 0, 0
      %s59 = smul.u32 7, %s58
    $region17: #{tpu_custom_call.1} parent=1 // pred_fallthru
      _
    // Predicated region
    $region18: #{tpu_custom_call.1} parent=1 // pred_check
      _
    $region19: #{tpu_custom_call.1} parent=1 // pred_check_branch
      %61 = sbr.rel (0) target = $region21
    $region20: #{tpu_custom_call.1} parent=1 // pred_region
      %s62 = sadd.s32 0, 0
      %s63 = smul.u32 7, %s62
      %p64 = scmp.lt.s32.totalorder %s63, 6
      %s65 = scalar_select %p64, %s63, 6
      %s66 = smul.addr %s65, 8
      %s67 = scalar_lea.vmem %s4, %s66
      %s68 = sadd.s32 0, 0
      %s69 = smul.u32 7, %s68
    $region21: #{tpu_custom_call.1} parent=1 // pred_fallthru
      _
    // Predicated region
    $region22: #{tpu_custom_call.1} parent=1 // pred_check
      _
    $region23: #{tpu_custom_call.1} parent=1 // pred_check_branch
      %71 = sbr.rel (0) target = $region25
    $region24: #{tpu_custom_call.1} parent=1 // pred_region
      %73 = vsyncadd [#allocation3], 0
      %s74 = sshll.u32 %s5, 4
      %s75 = int_to_ptr.hbm [resolvable:$true] %s74
      %s76 = sshll.u32 [#allocation2], 4
      %s77 = int_to_ptr.vmem [resolvable:$true] %s76
      %82 = dma.hbm_to_vmem [thread:$0]  %s75, 2048, %s77, [#allocation3], 128, 128, 8
    $region25: #{tpu_custom_call.1} parent=1 // pred_fallthru
      _
    // Predicated region
    $region26: #{tpu_custom_call.1} parent=1 // pred_check
      _
    $region27: #{tpu_custom_call.1} parent=1 // pred_check_branch
      %84 = sbr.rel (0) target = $region29
    $region28: #{tpu_custom_call.1} parent=1 // pred_region
      %86 = vsyncadd [#allocation6], 0
      %s87 = sshll.u32 %s6, 4
      %s88 = int_to_ptr.hbm [resolvable:$true] %s87
      %s89 = sshll.u32 [#allocation5], 4
      %s90 = int_to_ptr.vmem [resolvable:$true] %s89
      %95 = dma.hbm_to_vmem [thread:$0]  %s88, 2048, %s90, [#allocation6], 128, 128, 8
    $region29: #{tpu_custom_call.1} parent=1 // pred_fallthru
      _
    // Predicated region
    $region30: #{tpu_custom_call.1} parent=1 // pred_check
      _
    $region31: #{tpu_custom_call.1} parent=1 // pred_check_branch
      %97 = sbr.rel (0) target = $region33
    $region32: #{tpu_custom_call.1} parent=1 // pred_region
      _
    $region33: #{tpu_custom_call.1} parent=1 // pred_fallthru
      _
    // Predicated region
    $region34: #{tpu_custom_call.1} parent=1 // pred_check
      _
    $region35: #{tpu_custom_call.1} parent=1 // pred_check_branch
      %99 = sbr.rel (0) target = $region37
    $region36: #{tpu_custom_call.1} parent=1 // pred_region
      _
    $region37: #{tpu_custom_call.1} parent=1 // pred_fallthru
      _
    // Predicated region
    $region38: #{tpu_custom_call.1} parent=1 // pred_check
      _
    $region39: #{tpu_custom_call.1} parent=1 // pred_check_branch
      %101 = sbr.rel (0) target = $region41
    $region40: #{tpu_custom_call.1} parent=1 // pred_region
      %103 = vsyncadd [#allocation6], 0
      %s104 = sshll.u32 %s9, 4
      %s105 = int_to_ptr.hbm [resolvable:$true] %s104
      %s106 = sshll.u32 [#allocation7], 4
      %s107 = int_to_ptr.vmem [resolvable:$true] %s106
      %112 = dma.hbm_to_vmem [thread:$0]  %s105, 2048, %s107, [#allocation6], 128, 128, 8
    $region41: #{tpu_custom_call.1} parent=1 // pred_fallthru
      _
    // Predicated region
    $region42: #{tpu_custom_call.1} parent=1 // pred_check
      _
    $region43: #{tpu_custom_call.1} parent=1 // pred_check_branch
      %114 = sbr.rel (0) target = $region45
    $region44: #{tpu_custom_call.1} parent=1 // pred_region
      _
    $region45: #{tpu_custom_call.1} parent=1 // pred_fallthru
      _
    // Predicated region
    $region46: #{tpu_custom_call.1} parent=1 // pred_check
      _
    $region47: #{tpu_custom_call.1} parent=1 // pred_check_branch
      %116 = sbr.rel (0) target = $region49
    $region48: #{tpu_custom_call.1} parent=1 // pred_region
      _
    $region49: #{tpu_custom_call.1} parent=1 // pred_fallthru
      _
    // Predicated region
    $region50: #{tpu_custom_call.1} parent=1 // pred_check
      _
    $region51: #{tpu_custom_call.1} parent=1 // pred_check_branch
      %118 = sbr.rel (0) target = $region53
    $region52: #{tpu_custom_call.1} parent=1 // pred_region
      %120 = dma.done [#allocation3], 2048
    $region53: #{tpu_custom_call.1} parent=1 // pred_fallthru
      _
    // Predicated region
    $region54: #{tpu_custom_call.1} parent=1 // pred_check
      _
    $region55: #{tpu_custom_call.1} parent=1 // pred_check_branch
      %122 = sbr.rel (0) target = $region57
    $region56: #{tpu_custom_call.1} parent=1 // pred_region
      %124 = dma.done [#allocation6], 2048
    $region57: #{tpu_custom_call.1} parent=1 // pred_fallthru
      _
    // Predicated region
    $region58: #{tpu_custom_call.1} parent=1 // pred_check
      _
    $region59: #{tpu_custom_call.1} parent=1 // pred_check_branch
      %126 = sbr.rel (0) target = $region61
    $region60: #{tpu_custom_call.1} parent=1 // pred_region
      %128 = dma.done [#allocation6], 2048
    $region61: #{tpu_custom_call.1} parent=1 // pred_fallthru
      _
    %s129 = sadd.s32 0, 0
    %s130 = smul.u32 7, %s129
    %p131 = scmp.lt.s32.totalorder %s130, 6
    %s132 = scalar_select %p131, %s130, 6
    %s133 = smul.addr %s132, 8
    %s134 = scalar_lea.vmem %s0, %s133
    %s135 = sadd.s32 0, 0
    %s136 = smul.u32 7, %s135
    %p137 = scmp.lt.s32.totalorder %s136, 6
    %s138 = scalar_select %p137, %s136, 6
    %s139 = smul.addr %s138, 8
    %s140 = scalar_lea.vmem %s1, %s139
    %s141 = sadd.s32 0, 0
    %s142 = smul.u32 7, %s141
    %p143 = scmp.lt.s32.totalorder %s142, 6
    %s144 = scalar_select %p143, %s142, 6
    %s145 = smul.addr %s144, 8
    %s146 = scalar_lea.vmem %s2, %s145
    %s147 = sadd.s32 0, 0
    %s148 = smul.u32 7, %s147
    %p149 = scmp.lt.s32.totalorder %s148, 6
    %s150 = scalar_select %p149, %s148, 6
    %s151 = smul.addr %s150, 8
    %s152 = scalar_lea.vmem %s3, %s151
    %s153 = sadd.s32 0, 0
    %s154 = smul.u32 7, %s153
    %p155 = scmp.lt.s32.totalorder %s154, 6
    %s156 = scalar_select %p155, %s154, 6
    %s157 = smul.addr %s156, 8
    %s158 = scalar_lea.vmem %s4, %s157
    %s159 = sadd.s32 0, 0
    %s160 = smul.u32 7, %s159
    %p161 = scmp.lt.s32.totalorder %s160, 6
    %s162 = scalar_select %p161, %s160, 6
    %s163 = smul.addr %s162, 8
    %s164 = scalar_lea.vmem %s0, %s163
    %s165 = sadd.s32 0, 0
    %s166 = smul.u32 7, %s165
    %s167 = sadd.s32 0, 0
    %s168 = smul.u32 7, %s167
    %p169 = scmp.lt.s32.totalorder %s168, 6
    %s170 = scalar_select %p169, %s168, 6
    %s171 = smul.addr %s170, 8
    %s172 = scalar_lea.vmem %s1, %s171
    %s173 = sadd.s32 0, 0
    %s174 = smul.u32 7, %s173
    %s175 = sadd.s32 0, 0
    %s176 = smul.u32 7, %s175
    %p177 = scmp.lt.s32.totalorder %s176, 6
    %s178 = scalar_select %p177, %s176, 6
    %s179 = smul.addr %s178, 8
    %s180 = scalar_lea.vmem %s2, %s179
    %s181 = sadd.s32 0, 0
    %s182 = smul.u32 7, %s181
    %s183 = sadd.s32 0, 0
    %s184 = smul.u32 7, %s183
    %p185 = scmp.lt.s32.totalorder %s184, 6
    %s186 = scalar_select %p185, %s184, 6
    %s187 = smul.addr %s186, 8
    %s188 = scalar_lea.vmem %s3, %s187
    %s189 = sadd.s32 0, 0
    %s190 = smul.u32 7, %s189
    %s191 = sadd.s32 0, 0
    %s192 = smul.u32 7, %s191
    %p193 = scmp.lt.s32.totalorder %s192, 6
    %s194 = scalar_select %p193, %s192, 6
    %s195 = smul.addr %s194, 8
    %s196 = scalar_lea.vmem %s4, %s195
    %s197 = sadd.s32 0, 0
    %s198 = smul.u32 7, %s197
    %v199 = vld [vmem:[%s172] sm:$0xff]
    %v200 = vld [vmem:[%s172 + $0x8] sm:$0xff]
    %v201 = vld [vmem:[%s172 + $0x10] sm:$0xff]
    %v202 = vld [vmem:[%s172 + $0x18] sm:$0xff]
    %v203 = vld [vmem:[%s172 + $0x20] sm:$0xff]
    %v204 = vld [vmem:[%s172 + $0x28] sm:$0xff]
    %v205 = vld [vmem:[%s172 + $0x30] sm:$0xff]
    %v206 = vld [vmem:[%s180] sm:$0xff]
    %v207 = vld [vmem:[%s180 + $0x8] sm:$0xff]
    %v208 = vld [vmem:[%s180 + $0x10] sm:$0xff]
    %v209 = vld [vmem:[%s180 + $0x18] sm:$0xff]
    %v210 = vld [vmem:[%s180 + $0x20] sm:$0xff]
    %v211 = vld [vmem:[%s180 + $0x28] sm:$0xff]
    %v212 = vld [vmem:[%s180 + $0x30] sm:$0xff]
    %v213 = vld [vmem:[%s188] sm:$0xff]
    %v214 = vld [vmem:[%s188 + $0x8] sm:$0xff]
    %v215 = vld [vmem:[%s188 + $0x10] sm:$0xff]
    %v216 = vld [vmem:[%s188 + $0x18] sm:$0xff]
    %v217 = vld [vmem:[%s188 + $0x20] sm:$0xff]
    %v218 = vld [vmem:[%s188 + $0x28] sm:$0xff]
    %v219 = vld [vmem:[%s188 + $0x30] sm:$0xff]
    %v220 = vld [vmem:[%s196] sm:$0xff]
    %v221 = vld [vmem:[%s196 + $0x8] sm:$0xff]
    %v222 = vld [vmem:[%s196 + $0x10] sm:$0xff]
    %v223 = vld [vmem:[%s196 + $0x18] sm:$0xff]
    %v224 = vld [vmem:[%s196 + $0x20] sm:$0xff]
    %v225 = vld [vmem:[%s196 + $0x28] sm:$0xff]
    %v226 = vld [vmem:[%s196 + $0x30] sm:$0xff]
    %v227 = vmul.f32 %v220, %v220
    %v228 = vmul.f32 %v221, %v221
    %v229 = vmul.f32 %v222, %v222
    %v230 = vmul.f32 %v223, %v223
    %v231 = vmul.f32 %v224, %v224
    %v232 = vmul.f32 %v225, %v225
    %v233 = vmul.f32 %v226, %v226
    %vm234 = vcmask 64512
    %v235 = vsel %vm234, %v227, 0.0
    %236 = vadd.xlane.f32.xlu0 %v235
    %v237 = vpop.xlane.xlu0 %236
    %v238 = vsel %vm234, %v228, 0.0
    %239 = vadd.xlane.f32.xlu0 %v238
    %v240 = vpop.xlane.xlu0 %239
    %v241 = vsel %vm234, %v229, 0.0
    %242 = vadd.xlane.f32.xlu0 %v241
    %v243 = vpop.xlane.xlu0 %242
    %v244 = vsel %vm234, %v230, 0.0
    %245 = vadd.xlane.f32.xlu0 %v244
    %v246 = vpop.xlane.xlu0 %245
    %v247 = vsel %vm234, %v231, 0.0
    %248 = vadd.xlane.f32.xlu0 %v247
    %v249 = vpop.xlane.xlu0 %248
    %v250 = vsel %vm234, %v232, 0.0
    %251 = vadd.xlane.f32.xlu0 %v250
    %v252 = vpop.xlane.xlu0 %251
    %v253 = vsel %vm234, %v233, 0.0
    %254 = vadd.xlane.f32.xlu0 %v253
    %v255 = vpop.xlane.xlu0 %254
    %v256 = vadd.f32 %v237, 1e-08
    %v257 = vadd.f32 %v240, 1e-08
    %v258 = vadd.f32 %v243, 1e-08
    %v259 = vadd.f32 %v246, 1e-08
    %v260 = vadd.f32 %v249, 1e-08
    %v261 = vadd.f32 %v252, 1e-08
    %v262 = vadd.f32 %v255, 1e-08
    %v263 = vrsqrt.pop %v256
    %v264 = vmul.f32 %v263, %v256
    %v265 = vmul.f32 %v264, %v263
    %v266 = vmul.f32 0.5, %v265
    %v267 = vsub.f32 1.5, %v266
    %v268 = vmul.f32 %v263, %v267
    %v269 = vmul.f32 %v256, %v268
    %vm270 = vcmp.eq.f32.partialorder %v256, inf
    %v271 = vsel %vm270, %v256, %v269
    %vm272 = vcmp.eq.f32.partialorder %v256, 0.0
    %v273 = vand.u32 %v256, 2147483648
    %v274 = vsel %vm272, %v273, %v271
    %v275 = vrsqrt.pop %v257
    %v276 = vmul.f32 %v275, %v257
    %v277 = vmul.f32 %v276, %v275
    %v278 = vmul.f32 0.5, %v277
    %v279 = vsub.f32 1.5, %v278
    %v280 = vmul.f32 %v275, %v279
    %v281 = vmul.f32 %v257, %v280
    %vm282 = vcmp.eq.f32.partialorder %v257, inf
    %v283 = vsel %vm282, %v257, %v281
    %vm284 = vcmp.eq.f32.partialorder %v257, 0.0
    %v285 = vand.u32 %v257, 2147483648
    %v286 = vsel %vm284, %v285, %v283
    %v287 = vrsqrt.pop %v258
    %v288 = vmul.f32 %v287, %v258
    %v289 = vmul.f32 %v288, %v287
    %v290 = vmul.f32 0.5, %v289
    %v291 = vsub.f32 1.5, %v290
    %v292 = vmul.f32 %v287, %v291
    %v293 = vmul.f32 %v258, %v292
    %vm294 = vcmp.eq.f32.partialorder %v258, inf
    %v295 = vsel %vm294, %v258, %v293
    %vm296 = vcmp.eq.f32.partialorder %v258, 0.0
    %v297 = vand.u32 %v258, 2147483648
    %v298 = vsel %vm296, %v297, %v295
    %v299 = vrsqrt.pop %v259
    %v300 = vmul.f32 %v299, %v259
    %v301 = vmul.f32 %v300, %v299
    %v302 = vmul.f32 0.5, %v301
    %v303 = vsub.f32 1.5, %v302
    %v304 = vmul.f32 %v299, %v303
    %v305 = vmul.f32 %v259, %v304
    %vm306 = vcmp.eq.f32.partialorder %v259, inf
    %v307 = vsel %vm306, %v259, %v305
    %vm308 = vcmp.eq.f32.partialorder %v259, 0.0
    %v309 = vand.u32 %v259, 2147483648
    %v310 = vsel %vm308, %v309, %v307
    %v311 = vrsqrt.pop %v260
    %v312 = vmul.f32 %v311, %v260
    %v313 = vmul.f32 %v312, %v311
    %v314 = vmul.f32 0.5, %v313
    %v315 = vsub.f32 1.5, %v314
    %v316 = vmul.f32 %v311, %v315
    %v317 = vmul.f32 %v260, %v316
    %vm318 = vcmp.eq.f32.partialorder %v260, inf
    %v319 = vsel %vm318, %v260, %v317
    %vm320 = vcmp.eq.f32.partialorder %v260, 0.0
    %v321 = vand.u32 %v260, 2147483648
    %v322 = vsel %vm320, %v321, %v319
    %v323 = vrsqrt.pop %v261
    %v324 = vmul.f32 %v323, %v261
    %v325 = vmul.f32 %v324, %v323
    %v326 = vmul.f32 0.5, %v325
    %v327 = vsub.f32 1.5, %v326
    %v328 = vmul.f32 %v323, %v327
    %v329 = vmul.f32 %v261, %v328
    %vm330 = vcmp.eq.f32.partialorder %v261, inf
    %v331 = vsel %vm330, %v261, %v329
    %vm332 = vcmp.eq.f32.partialorder %v261, 0.0
    %v333 = vand.u32 %v261, 2147483648
    %v334 = vsel %vm332, %v333, %v331
    %v335 = vrsqrt.pop %v262
    %v336 = vmul.f32 %v335, %v262
    %v337 = vmul.f32 %v336, %v335
    %v338 = vmul.f32 0.5, %v337
    %v339 = vsub.f32 1.5, %v338
    %v340 = vmul.f32 %v335, %v339
    %v341 = vmul.f32 %v262, %v340
    %vm342 = vcmp.eq.f32.partialorder %v262, inf
    %v343 = vsel %vm342, %v262, %v341
    %vm344 = vcmp.eq.f32.partialorder %v262, 0.0
    %v345 = vand.u32 %v262, 2147483648
    %v346 = vsel %vm344, %v345, %v343
    %v347 = vadd.f32 %v274, 1.0
    %v348 = vadd.f32 %v286, 1.0
    %v349 = vadd.f32 %v298, 1.0
    %v350 = vadd.f32 %v310, 1.0
    %v351 = vadd.f32 %v322, 1.0
    %v352 = vadd.f32 %v334, 1.0
    %v353 = vadd.f32 %v346, 1.0
    %v354 = vrcp.pop %v347
    %v355 = vmul.f32 %v347, %v354
    %v356 = vsub.f32 1.0, %v355
    %v357 = vmul.f32 %v354, %v356
    %v358 = vadd.f32 %v354, %v357
    %vm359 = vweird.f32 %v347
    %vm360 = vweird.f32 %v354
    %vm361 = vmor %vm359, %vm360
    %v362 = vsel %vm361, %v354, %v358
    %v363 = vand.u32 2147483647, %v347
    %vm364 = vcmp.eq.f32.partialorder %v363, 8.507059e+37
    %v365 = vand.u32 %v347, 2147483648
    %v366 = vor.u32 1.1754944e-38, %v365
    %v367 = vsel %vm364, %v366, %v362
    %v368 = vmul.f32 %v220, %v367
    %v369 = vrcp.pop %v348
    %v370 = vmul.f32 %v348, %v369
    %v371 = vsub.f32 1.0, %v370
    %v372 = vmul.f32 %v369, %v371
    %v373 = vadd.f32 %v369, %v372
    %vm374 = vweird.f32 %v348
    %vm375 = vweird.f32 %v369
    %vm376 = vmor %vm374, %vm375
    %v377 = vsel %vm376, %v369, %v373
    %v378 = vand.u32 2147483647, %v348
    %vm379 = vcmp.eq.f32.partialorder %v378, 8.507059e+37
    %v380 = vand.u32 %v348, 2147483648
    %v381 = vor.u32 1.1754944e-38, %v380
    %v382 = vsel %vm379, %v381, %v377
    %v383 = vmul.f32 %v221, %v382
    %v384 = vrcp.pop %v349
    %v385 = vmul.f32 %v349, %v384
    %v386 = vsub.f32 1.0, %v385
    %v387 = vmul.f32 %v384, %v386
    %v388 = vadd.f32 %v384, %v387
    %vm389 = vweird.f32 %v349
    %vm390 = vweird.f32 %v384
    %vm391 = vmor %vm389, %vm390
    %v392 = vsel %vm391, %v384, %v388
    %v393 = vand.u32 2147483647, %v349
    %vm394 = vcmp.eq.f32.partialorder %v393, 8.507059e+37
    %v395 = vand.u32 %v349, 2147483648
    %v396 = vor.u32 1.1754944e-38, %v395
    %v397 = vsel %vm394, %v396, %v392
    %v398 = vmul.f32 %v222, %v397
    %v399 = vrcp.pop %v350
    %v400 = vmul.f32 %v350, %v399
    %v401 = vsub.f32 1.0, %v400
    %v402 = vmul.f32 %v399, %v401
    %v403 = vadd.f32 %v399, %v402
    %vm404 = vweird.f32 %v350
    %vm405 = vweird.f32 %v399
    %vm406 = vmor %vm404, %vm405
    %v407 = vsel %vm406, %v399, %v403
    %v408 = vand.u32 2147483647, %v350
    %vm409 = vcmp.eq.f32.partialorder %v408, 8.507059e+37
    %v410 = vand.u32 %v350, 2147483648
    %v411 = vor.u32 1.1754944e-38, %v410
    %v412 = vsel %vm409, %v411, %v407
    %v413 = vmul.f32 %v223, %v412
    %v414 = vrcp.pop %v351
    %v415 = vmul.f32 %v351, %v414
    %v416 = vsub.f32 1.0, %v415
    %v417 = vmul.f32 %v414, %v416
    %v418 = vadd.f32 %v414, %v417
    %vm419 = vweird.f32 %v351
    %vm420 = vweird.f32 %v414
    %vm421 = vmor %vm419, %vm420
    %v422 = vsel %vm421, %v414, %v418
    %v423 = vand.u32 2147483647, %v351
    %vm424 = vcmp.eq.f32.partialorder %v423, 8.507059e+37
    %v425 = vand.u32 %v351, 2147483648
    %v426 = vor.u32 1.1754944e-38, %v425
    %v427 = vsel %vm424, %v426, %v422
    %v428 = vmul.f32 %v224, %v427
    %v429 = vrcp.pop %v352
    %v430 = vmul.f32 %v352, %v429
    %v431 = vsub.f32 1.0, %v430
    %v432 = vmul.f32 %v429, %v431
    %v433 = vadd.f32 %v429, %v432
    %vm434 = vweird.f32 %v352
    %vm435 = vweird.f32 %v429
    %vm436 = vmor %vm434, %vm435
    %v437 = vsel %vm436, %v429, %v433
    %v438 = vand.u32 2147483647, %v352
    %vm439 = vcmp.eq.f32.partialorder %v438, 8.507059e+37
    %v440 = vand.u32 %v352, 2147483648
    %v441 = vor.u32 1.1754944e-38, %v440
    %v442 = vsel %vm439, %v441, %v437
    %v443 = vmul.f32 %v225, %v442
    %v444 = vrcp.pop %v353
    %v445 = vmul.f32 %v353, %v444
    %v446 = vsub.f32 1.0, %v445
    %v447 = vmul.f32 %v444, %v446
    %v448 = vadd.f32 %v444, %v447
    %vm449 = vweird.f32 %v353
    %vm450 = vweird.f32 %v444
    %vm451 = vmor %vm449, %vm450
    %v452 = vsel %vm451, %v444, %v448
    %v453 = vand.u32 2147483647, %v353
    %vm454 = vcmp.eq.f32.partialorder %v453, 8.507059e+37
    %v455 = vand.u32 %v353, 2147483648
    %v456 = vor.u32 1.1754944e-38, %v455
    %v457 = vsel %vm454, %v456, %v452
    %v458 = vmul.f32 %v226, %v457
    %v459 = vld [vmem:[#allocation2] sm:$0xff]
    %v460 = vld [vmem:[#allocation2 + $0x8] sm:$0xff]
    %v461 = vld [vmem:[#allocation2 + $0x10] sm:$0xff]
    %v462 = vld [vmem:[#allocation2 + $0x18] sm:$0xff]
    %v463 = vld [vmem:[#allocation2 + $0x20] sm:$0xff]
    %v464 = vld [vmem:[#allocation2 + $0x28] sm:$0xff]
    %v465 = vld [vmem:[#allocation2 + $0x30] sm:$0xff]
    %v466 = vld [vmem:[#allocation2 + $0x38] sm:$0xff]
    %v467 = vld [vmem:[#allocation2 + $0x40] sm:$0xff]
    %v468 = vld [vmem:[#allocation2 + $0x48] sm:$0xff]
    %v469 = vld [vmem:[#allocation2 + $0x50] sm:$0xff]
    %v470 = vld [vmem:[#allocation2 + $0x58] sm:$0xff]
    %v471 = vld [vmem:[#allocation2 + $0x60] sm:$0xff]
    %v472 = vld [vmem:[#allocation2 + $0x68] sm:$0xff]
    %v473 = vld [vmem:[#allocation2 + $0x70] sm:$0xff]
    %v474 = vld [vmem:[#allocation2 + $0x78] sm:$0xff]
    %v475 = vld [vmem:[#allocation5] sm:$0xff]
    %v476 = vld [vmem:[#allocation5 + $0x8] sm:$0xff]
    %v477 = vld [vmem:[#allocation5 + $0x10] sm:$0xff]
    %v478 = vld [vmem:[#allocation5 + $0x18] sm:$0xff]
    %v479 = vld [vmem:[#allocation5 + $0x20] sm:$0xff]
    %v480 = vld [vmem:[#allocation5 + $0x28] sm:$0xff]
    %v481 = vld [vmem:[#allocation5 + $0x30] sm:$0xff]
    %v482 = vld [vmem:[#allocation5 + $0x38] sm:$0xff]
    %v483 = vld [vmem:[#allocation5 + $0x40] sm:$0xff]
    %v484 = vld [vmem:[#allocation5 + $0x48] sm:$0xff]
    %v485 = vld [vmem:[#allocation5 + $0x50] sm:$0xff]
    %v486 = vld [vmem:[#allocation5 + $0x58] sm:$0xff]
    %v487 = vld [vmem:[#allocation5 + $0x60] sm:$0xff]
    %v488 = vld [vmem:[#allocation5 + $0x68] sm:$0xff]
    %v489 = vld [vmem:[#allocation5 + $0x70] sm:$0xff]
    %v490 = vld [vmem:[#allocation5 + $0x78] sm:$0xff]
    %491 = vmatpush.msra.mxu0 %v490
    %492 = vmatpush.msra.mxu0 %v489
    %493 = vmatpush.msra.mxu0 %v488
    %494 = vmatpush.msra.mxu0 %v487
    %495 = vmatpush.msra.mxu0 %v486
    %496 = vmatpush.msra.mxu0 %v485
    %497 = vmatpush.msra.mxu0 %v484
    %498 = vmatpush.msra.mxu0 %v483
    %499 = vmatpush.msra.mxu0 %v482
    %500 = vmatpush.msra.mxu0 %v481
    %501 = vmatpush.msra.mxu0 %v480
    %502 = vmatpush.msra.mxu0 %v479
    %503 = vmatpush.msra.mxu0 %v478
    %504 = vmatpush.msra.mxu0 %v477
    %505 = vmatpush.msra.mxu0 %v476
    %506 = vmatpush.msra.mxu0 %v475
    %507 = vmatmul.f32.gmra.mxu0 %v206
    %v508 = vpop.f32.mrf.mxu0
    %v509 = vadd.f32 0.0, %v508
    %510 = vmatmul.f32.gmra.mxu0 %v207
    %v511 = vpop.f32.mrf.mxu0
    %v512 = vadd.f32 0.0, %v511
    %513 = vmatmul.f32.gmra.mxu0 %v208
    %v514 = vpop.f32.mrf.mxu0
    %v515 = vadd.f32 0.0, %v514
    %516 = vmatmul.f32.gmra.mxu0 %v209
    %v517 = vpop.f32.mrf.mxu0
    %v518 = vadd.f32 0.0, %v517
    %519 = vmatmul.f32.gmra.mxu0 %v210
    %v520 = vpop.f32.mrf.mxu0
    %v521 = vadd.f32 0.0, %v520
    %522 = vmatmul.f32.gmra.mxu0 %v211
    %v523 = vpop.f32.mrf.mxu0
    %v524 = vadd.f32 0.0, %v523
    %525 = vmatmul.f32.gmra.mxu0 %v212
    %v526 = vpop.f32.mrf.mxu0
    %v527 = vadd.f32 0.0, %v526
    %528 = vdwg.mxu0
    %529 = vmatpush.msra.mxu0 %v474
    %530 = vmatpush.msra.mxu0 %v473
    %531 = vmatpush.msra.mxu0 %v472
    %532 = vmatpush.msra.mxu0 %v471
    %533 = vmatpush.msra.mxu0 %v470
    %534 = vmatpush.msra.mxu0 %v469
    %535 = vmatpush.msra.mxu0 %v468
    %536 = vmatpush.msra.mxu0 %v467
    %537 = vmatpush.msra.mxu0 %v466
    %538 = vmatpush.msra.mxu0 %v465
    %539 = vmatpush.msra.mxu0 %v464
    %540 = vmatpush.msra.mxu0 %v463
    %541 = vmatpush.msra.mxu0 %v462
    %542 = vmatpush.msra.mxu0 %v461
    %543 = vmatpush.msra.mxu0 %v460
    %544 = vmatpush.msra.mxu0 %v459
    %545 = vmatmul.f32.gmra.mxu0 %v199
    %v546 = vpop.f32.mrf.mxu0
    %v547 = vadd.f32 %v509, %v546
    %548 = vmatmul.f32.gmra.mxu0 %v200
    %v549 = vpop.f32.mrf.mxu0
    %v550 = vadd.f32 %v512, %v549
    %551 = vmatmul.f32.gmra.mxu0 %v201
    %v552 = vpop.f32.mrf.mxu0
    %v553 = vadd.f32 %v515, %v552
    %554 = vmatmul.f32.gmra.mxu0 %v202
    %v555 = vpop.f32.mrf.mxu0
    %v556 = vadd.f32 %v518, %v555
    %557 = vmatmul.f32.gmra.mxu0 %v203
    %v558 = vpop.f32.mrf.mxu0
    %v559 = vadd.f32 %v521, %v558
    %560 = vmatmul.f32.gmra.mxu0 %v204
    %v561 = vpop.f32.mrf.mxu0
    %v562 = vadd.f32 %v524, %v561
    %563 = vmatmul.f32.gmra.mxu0 %v205
    %v564 = vpop.f32.mrf.mxu0
    %v565 = vadd.f32 %v527, %v564
    %566 = vdwg.mxu0
    %v567 = vld [vmem:[%s7] sm:$0xff]
    %v569 = vsel %vm234, %v213, 0
    %v572 = vsel %vm234, %v214, 0
    %v575 = vsel %vm234, %v215, 0
    %v578 = vsel %vm234, %v216, 0
    %v581 = vsel %vm234, %v217, 0
    %v584 = vsel %vm234, %v218, 0
    %v587 = vsel %vm234, %v219, 0
    %589 = vmatpush.msra.mxu0 0.0
    %590 = vmatpush.msra.mxu0 0.0
    %591 = vmatpush.msra.mxu0 0.0
    %592 = vmatpush.msra.mxu0 0.0
    %593 = vmatpush.msra.mxu0 0.0
    %594 = vmatpush.msra.mxu0 0.0
    %595 = vmatpush.msra.mxu0 0.0
    %596 = vmatpush.msra.mxu0 0.0
    %597 = vmatpush.msra.mxu0 0.0
    %598 = vmatpush.msra.mxu0 0.0
    %599 = vmatpush.msra.mxu0 0.0
    %600 = vmatpush.msra.mxu0 0.0
    %601 = vmatpush.msra.mxu0 0.0
    %602 = vmatpush.msra.mxu0 0.0
    %603 = vmatpush.msra.mxu0 0.0
    %604 = vmatpush.msra.mxu0 %v567
    %605 = vmatmul.f32.gmra.mxu0 %v569
    %v606 = vpop.f32.mrf.mxu0
    %v607 = vadd.f32 0.0, %v606
    %608 = vmatmul.f32.gmra.mxu0 %v572
    %v609 = vpop.f32.mrf.mxu0
    %v610 = vadd.f32 0.0, %v609
    %611 = vmatmul.f32.gmra.mxu0 %v575
    %v612 = vpop.f32.mrf.mxu0
    %v613 = vadd.f32 0.0, %v612
    %614 = vmatmul.f32.gmra.mxu0 %v578
    %v615 = vpop.f32.mrf.mxu0
    %v616 = vadd.f32 0.0, %v615
    %617 = vmatmul.f32.gmra.mxu0 %v581
    %v618 = vpop.f32.mrf.mxu0
    %v619 = vadd.f32 0.0, %v618
    %620 = vmatmul.f32.gmra.mxu0 %v584
    %v621 = vpop.f32.mrf.mxu0
    %v622 = vadd.f32 0.0, %v621
    %623 = vmatmul.f32.gmra.mxu0 %v587
    %v624 = vpop.f32.mrf.mxu0
    %v625 = vadd.f32 0.0, %v624
    %626 = vdwg.mxu0
    %v627 = vadd.f32 %v547, %v607
    %v628 = vadd.f32 %v550, %v610
    %v629 = vadd.f32 %v553, %v613
    %v630 = vadd.f32 %v556, %v616
    %v631 = vadd.f32 %v559, %v619
    %v632 = vadd.f32 %v562, %v622
    %v633 = vadd.f32 %v565, %v625
    %v634 = vld [vmem:[%s8] sm:$0x1]
    %v636 = vperm.slane %v634, 0
    %v638 = vadd.f32 %v627, %v636
    %v639 = vadd.f32 %v628, %v636
    %v640 = vadd.f32 %v629, %v636
    %v641 = vadd.f32 %v630, %v636
    %v642 = vadd.f32 %v631, %v636
    %v643 = vadd.f32 %v632, %v636
    %v644 = vadd.f32 %v633, %v636
    %v645 = vxor.u32 %v638, 2147483648
    %v646 = vxor.u32 %v639, 2147483648
    %v647 = vxor.u32 %v640, 2147483648
    %v648 = vxor.u32 %v641, 2147483648
    %v649 = vxor.u32 %v642, 2147483648
    %v650 = vxor.u32 %v643, 2147483648
    %v651 = vxor.u32 %v644, 2147483648
    %v652 = vmul.f32 %v645, 1.442695
    %v653 = vpow.pop %v652
    %v654 = vmul.f32 %v646, 1.442695
    %v655 = vpow.pop %v654
    %v656 = vmul.f32 %v647, 1.442695
    %v657 = vpow.pop %v656
    %v658 = vmul.f32 %v648, 1.442695
    %v659 = vpow.pop %v658
    %v660 = vmul.f32 %v649, 1.442695
    %v661 = vpow.pop %v660
    %v662 = vmul.f32 %v650, 1.442695
    %v663 = vpow.pop %v662
    %v664 = vmul.f32 %v651, 1.442695
    %v665 = vpow.pop %v664
    %v666 = vadd.f32 %v653, 1.0
    %v667 = vadd.f32 %v655, 1.0
    %v668 = vadd.f32 %v657, 1.0
    %v669 = vadd.f32 %v659, 1.0
    %v670 = vadd.f32 %v661, 1.0
    %v671 = vadd.f32 %v663, 1.0
    %v672 = vadd.f32 %v665, 1.0
    %v673 = vrcp.pop %v666
    %v674 = vmul.f32 %v666, %v673
    %v675 = vsub.f32 1.0, %v674
    %v676 = vmul.f32 %v673, %v675
    %v677 = vadd.f32 %v673, %v676
    %vm678 = vweird.f32 %v666
    %vm679 = vweird.f32 %v673
    %vm680 = vmor %vm678, %vm679
    %v681 = vsel %vm680, %v673, %v677
    %v682 = vand.u32 2147483647, %v666
    %vm683 = vcmp.eq.f32.partialorder %v682, 8.507059e+37
    %v684 = vand.u32 %v666, 2147483648
    %v685 = vor.u32 1.1754944e-38, %v684
    %v686 = vsel %vm683, %v685, %v681
    %v687 = vmul.f32 1.0, %v686
    %v688 = vrcp.pop %v667
    %v689 = vmul.f32 %v667, %v688
    %v690 = vsub.f32 1.0, %v689
    %v691 = vmul.f32 %v688, %v690
    %v692 = vadd.f32 %v688, %v691
    %vm693 = vweird.f32 %v667
    %vm694 = vweird.f32 %v688
    %vm695 = vmor %vm693, %vm694
    %v696 = vsel %vm695, %v688, %v692
    %v697 = vand.u32 2147483647, %v667
    %vm698 = vcmp.eq.f32.partialorder %v697, 8.507059e+37
    %v699 = vand.u32 %v667, 2147483648
    %v700 = vor.u32 1.1754944e-38, %v699
    %v701 = vsel %vm698, %v700, %v696
    %v702 = vmul.f32 1.0, %v701
    %v703 = vrcp.pop %v668
    %v704 = vmul.f32 %v668, %v703
    %v705 = vsub.f32 1.0, %v704
    %v706 = vmul.f32 %v703, %v705
    %v707 = vadd.f32 %v703, %v706
    %vm708 = vweird.f32 %v668
    %vm709 = vweird.f32 %v703
    %vm710 = vmor %vm708, %vm709
    %v711 = vsel %vm710, %v703, %v707
    %v712 = vand.u32 2147483647, %v668
    %vm713 = vcmp.eq.f32.partialorder %v712, 8.507059e+37
    %v714 = vand.u32 %v668, 2147483648
    %v715 = vor.u32 1.1754944e-38, %v714
    %v716 = vsel %vm713, %v715, %v711
    %v717 = vmul.f32 1.0, %v716
    %v718 = vrcp.pop %v669
    %v719 = vmul.f32 %v669, %v718
    %v720 = vsub.f32 1.0, %v719
    %v721 = vmul.f32 %v718, %v720
    %v722 = vadd.f32 %v718, %v721
    %vm723 = vweird.f32 %v669
    %vm724 = vweird.f32 %v718
    %vm725 = vmor %vm723, %vm724
    %v726 = vsel %vm725, %v718, %v722
    %v727 = vand.u32 2147483647, %v669
    %vm728 = vcmp.eq.f32.partialorder %v727, 8.507059e+37
    %v729 = vand.u32 %v669, 2147483648
    %v730 = vor.u32 1.1754944e-38, %v729
    %v731 = vsel %vm728, %v730, %v726
    %v732 = vmul.f32 1.0, %v731
    %v733 = vrcp.pop %v670
    %v734 = vmul.f32 %v670, %v733
    %v735 = vsub.f32 1.0, %v734
    %v736 = vmul.f32 %v733, %v735
    %v737 = vadd.f32 %v733, %v736
    %vm738 = vweird.f32 %v670
    %vm739 = vweird.f32 %v733
    %vm740 = vmor %vm738, %vm739
    %v741 = vsel %vm740, %v733, %v737
    %v742 = vand.u32 2147483647, %v670
    %vm743 = vcmp.eq.f32.partialorder %v742, 8.507059e+37
    %v744 = vand.u32 %v670, 2147483648
    %v745 = vor.u32 1.1754944e-38, %v744
    %v746 = vsel %vm743, %v745, %v741
    %v747 = vmul.f32 1.0, %v746
    %v748 = vrcp.pop %v671
    %v749 = vmul.f32 %v671, %v748
    %v750 = vsub.f32 1.0, %v749
    %v751 = vmul.f32 %v748, %v750
    %v752 = vadd.f32 %v748, %v751
    %vm753 = vweird.f32 %v671
    %vm754 = vweird.f32 %v748
    %vm755 = vmor %vm753, %vm754
    %v756 = vsel %vm755, %v748, %v752
    %v757 = vand.u32 2147483647, %v671
    %vm758 = vcmp.eq.f32.partialorder %v757, 8.507059e+37
    %v759 = vand.u32 %v671, 2147483648
    %v760 = vor.u32 1.1754944e-38, %v759
    %v761 = vsel %vm758, %v760, %v756
    %v762 = vmul.f32 1.0, %v761
    %v763 = vrcp.pop %v672
    %v764 = vmul.f32 %v672, %v763
    %v765 = vsub.f32 1.0, %v764
    %v766 = vmul.f32 %v763, %v765
    %v767 = vadd.f32 %v763, %v766
    %vm768 = vweird.f32 %v672
    %vm769 = vweird.f32 %v763
    %vm770 = vmor %vm768, %vm769
    %v771 = vsel %vm770, %v763, %v767
    %v772 = vand.u32 2147483647, %v672
    %vm773 = vcmp.eq.f32.partialorder %v772, 8.507059e+37
    %v774 = vand.u32 %v672, 2147483648
    %v775 = vor.u32 1.1754944e-38, %v774
    %v776 = vsel %vm773, %v775, %v771
    %v777 = vmul.f32 1.0, %v776
    %v778 = vmul.f32 %v638, %v687
    %v779 = vmul.f32 %v639, %v702
    %v780 = vmul.f32 %v640, %v717
    %v781 = vmul.f32 %v641, %v732
    %v782 = vmul.f32 %v642, %v747
    %v783 = vmul.f32 %v643, %v762
    %v784 = vmul.f32 %v644, %v777
    %v785 = vld [vmem:[#allocation7] sm:$0xff]
    %v786 = vld [vmem:[#allocation7 + $0x8] sm:$0xff]
    %v787 = vld [vmem:[#allocation7 + $0x10] sm:$0xff]
    %v788 = vld [vmem:[#allocation7 + $0x18] sm:$0xff]
    %v789 = vld [vmem:[#allocation7 + $0x20] sm:$0xff]
    %v790 = vld [vmem:[#allocation7 + $0x28] sm:$0xff]
    %v791 = vld [vmem:[#allocation7 + $0x30] sm:$0xff]
    %v792 = vld [vmem:[#allocation7 + $0x38] sm:$0xff]
    %v793 = vld [vmem:[#allocation7 + $0x40] sm:$0xff]
    %v794 = vld [vmem:[#allocation7 + $0x48] sm:$0xff]
    %v795 = vld [vmem:[#allocation7 + $0x50] sm:$0xff]
    %v796 = vld [vmem:[#allocation7 + $0x58] sm:$0xff]
    %v797 = vld [vmem:[#allocation7 + $0x60] sm:$0xff]
    %v798 = vld [vmem:[#allocation7 + $0x68] sm:$0xff]
    %v799 = vld [vmem:[#allocation7 + $0x70] sm:$0xff]
    %v800 = vld [vmem:[#allocation7 + $0x78] sm:$0xff]
    %v801 = vld [vmem:[%s10] sm:$0x1]
    %v803 = vperm.slane %v801, 0
    %805 = vmatpush.msra.mxu0 %v800
    %806 = vmatpush.msra.mxu0 %v799
    %807 = vmatpush.msra.mxu0 %v798
    %808 = vmatpush.msra.mxu0 %v797
    %809 = vmatpush.msra.mxu0 %v796
    %810 = vmatpush.msra.mxu0 %v795
    %811 = vmatpush.msra.mxu0 %v794
    %812 = vmatpush.msra.mxu0 %v793
    %813 = vmatpush.msra.mxu0 %v792
    %814 = vmatpush.msra.mxu0 %v791
    %815 = vmatpush.msra.mxu0 %v790
    %816 = vmatpush.msra.mxu0 %v789
    %817 = vmatpush.msra.mxu0 %v788
    %818 = vmatpush.msra.mxu0 %v787
    %819 = vmatpush.msra.mxu0 %v786
    %820 = vmatpush.msra.mxu0 %v785
    %821 = vmatmul.f32.gmra.mxu0 %v778
    %v822 = vpop.f32.mrf.mxu0
    %v823 = vadd.f32 %v803, %v822
    %824 = vmatmul.f32.gmra.mxu0 %v779
    %v825 = vpop.f32.mrf.mxu0
    %v826 = vadd.f32 %v803, %v825
    %827 = vmatmul.f32.gmra.mxu0 %v780
    %v828 = vpop.f32.mrf.mxu0
    %v829 = vadd.f32 %v803, %v828
    %830 = vmatmul.f32.gmra.mxu0 %v781
    %v831 = vpop.f32.mrf.mxu0
    %v832 = vadd.f32 %v803, %v831
    %833 = vmatmul.f32.gmra.mxu0 %v782
    %v834 = vpop.f32.mrf.mxu0
    %v835 = vadd.f32 %v803, %v834
    %836 = vmatmul.f32.gmra.mxu0 %v783
    %v837 = vpop.f32.mrf.mxu0
    %v838 = vadd.f32 %v803, %v837
    %839 = vmatmul.f32.gmra.mxu0 %v784
    %v840 = vpop.f32.mrf.mxu0
    %v841 = vadd.f32 %v803, %v840
    %842 = vdwg.mxu0
    %v843 = vxor.u32 %v823, 2147483648
    %v844 = vxor.u32 %v826, 2147483648
    %v845 = vxor.u32 %v829, 2147483648
    %v846 = vxor.u32 %v832, 2147483648
    %v847 = vxor.u32 %v835, 2147483648
    %v848 = vxor.u32 %v838, 2147483648
    %v849 = vxor.u32 %v841, 2147483648
    %v850 = vmul.f32 %v843, 1.442695
    %v851 = vpow.pop %v850
    %v852 = vmul.f32 %v844, 1.442695
    %v853 = vpow.pop %v852
    %v854 = vmul.f32 %v845, 1.442695
    %v855 = vpow.pop %v854
    %v856 = vmul.f32 %v846, 1.442695
    %v857 = vpow.pop %v856
    %v858 = vmul.f32 %v847, 1.442695
    %v859 = vpow.pop %v858
    %v860 = vmul.f32 %v848, 1.442695
    %v861 = vpow.pop %v860
    %v862 = vmul.f32 %v849, 1.442695
    %v863 = vpow.pop %v862
    %v864 = vadd.f32 %v851, 1.0
    %v865 = vadd.f32 %v853, 1.0
    %v866 = vadd.f32 %v855, 1.0
    %v867 = vadd.f32 %v857, 1.0
    %v868 = vadd.f32 %v859, 1.0
    %v869 = vadd.f32 %v861, 1.0
    %v870 = vadd.f32 %v863, 1.0
    %v871 = vrcp.pop %v864
    %v872 = vmul.f32 %v864, %v871
    %v873 = vsub.f32 1.0, %v872
    %v874 = vmul.f32 %v871, %v873
    %v875 = vadd.f32 %v871, %v874
    %vm876 = vweird.f32 %v864
    %vm877 = vweird.f32 %v871
    %vm878 = vmor %vm876, %vm877
    %v879 = vsel %vm878, %v871, %v875
    %v880 = vand.u32 2147483647, %v864
    %vm881 = vcmp.eq.f32.partialorder %v880, 8.507059e+37
    %v882 = vand.u32 %v864, 2147483648
    %v883 = vor.u32 1.1754944e-38, %v882
    %v884 = vsel %vm881, %v883, %v879
    %v885 = vmul.f32 1.0, %v884
    %v886 = vrcp.pop %v865
    %v887 = vmul.f32 %v865, %v886
    %v888 = vsub.f32 1.0, %v887
    %v889 = vmul.f32 %v886, %v888
    %v890 = vadd.f32 %v886, %v889
    %vm891 = vweird.f32 %v865
    %vm892 = vweird.f32 %v886
    %vm893 = vmor %vm891, %vm892
    %v894 = vsel %vm893, %v886, %v890
    %v895 = vand.u32 2147483647, %v865
    %vm896 = vcmp.eq.f32.partialorder %v895, 8.507059e+37
    %v897 = vand.u32 %v865, 2147483648
    %v898 = vor.u32 1.1754944e-38, %v897
    %v899 = vsel %vm896, %v898, %v894
    %v900 = vmul.f32 1.0, %v899
    %v901 = vrcp.pop %v866
    %v902 = vmul.f32 %v866, %v901
    %v903 = vsub.f32 1.0, %v902
    %v904 = vmul.f32 %v901, %v903
    %v905 = vadd.f32 %v901, %v904
    %vm906 = vweird.f32 %v866
    %vm907 = vweird.f32 %v901
    %vm908 = vmor %vm906, %vm907
    %v909 = vsel %vm908, %v901, %v905
    %v910 = vand.u32 2147483647, %v866
    %vm911 = vcmp.eq.f32.partialorder %v910, 8.507059e+37
    %v912 = vand.u32 %v866, 2147483648
    %v913 = vor.u32 1.1754944e-38, %v912
    %v914 = vsel %vm911, %v913, %v909
    %v915 = vmul.f32 1.0, %v914
    %v916 = vrcp.pop %v867
    %v917 = vmul.f32 %v867, %v916
    %v918 = vsub.f32 1.0, %v917
    %v919 = vmul.f32 %v916, %v918
    %v920 = vadd.f32 %v916, %v919
    %vm921 = vweird.f32 %v867
    %vm922 = vweird.f32 %v916
    %vm923 = vmor %vm921, %vm922
    %v924 = vsel %vm923, %v916, %v920
    %v925 = vand.u32 2147483647, %v867
    %vm926 = vcmp.eq.f32.partialorder %v925, 8.507059e+37
    %v927 = vand.u32 %v867, 2147483648
    %v928 = vor.u32 1.1754944e-38, %v927
    %v929 = vsel %vm926, %v928, %v924
    %v930 = vmul.f32 1.0, %v929
    %v931 = vrcp.pop %v868
    %v932 = vmul.f32 %v868, %v931
    %v933 = vsub.f32 1.0, %v932
    %v934 = vmul.f32 %v931, %v933
    %v935 = vadd.f32 %v931, %v934
    %vm936 = vweird.f32 %v868
    %vm937 = vweird.f32 %v931
    %vm938 = vmor %vm936, %vm937
    %v939 = vsel %vm938, %v931, %v935
    %v940 = vand.u32 2147483647, %v868
    %vm941 = vcmp.eq.f32.partialorder %v940, 8.507059e+37
    %v942 = vand.u32 %v868, 2147483648
    %v943 = vor.u32 1.1754944e-38, %v942
    %v944 = vsel %vm941, %v943, %v939
    %v945 = vmul.f32 1.0, %v944
    %v946 = vrcp.pop %v869
    %v947 = vmul.f32 %v869, %v946
    %v948 = vsub.f32 1.0, %v947
    %v949 = vmul.f32 %v946, %v948
    %v950 = vadd.f32 %v946, %v949
    %vm951 = vweird.f32 %v869
    %vm952 = vweird.f32 %v946
    %vm953 = vmor %vm951, %vm952
    %v954 = vsel %vm953, %v946, %v950
    %v955 = vand.u32 2147483647, %v869
    %vm956 = vcmp.eq.f32.partialorder %v955, 8.507059e+37
    %v957 = vand.u32 %v869, 2147483648
    %v958 = vor.u32 1.1754944e-38, %v957
    %v959 = vsel %vm956, %v958, %v954
    %v960 = vmul.f32 1.0, %v959
    %v961 = vrcp.pop %v870
    %v962 = vmul.f32 %v870, %v961
    %v963 = vsub.f32 1.0, %v962
    %v964 = vmul.f32 %v961, %v963
    %v965 = vadd.f32 %v961, %v964
    %vm966 = vweird.f32 %v870
    %vm967 = vweird.f32 %v961
    %vm968 = vmor %vm966, %vm967
    %v969 = vsel %vm968, %v961, %v965
    %v970 = vand.u32 2147483647, %v870
    %vm971 = vcmp.eq.f32.partialorder %v970, 8.507059e+37
    %v972 = vand.u32 %v870, 2147483648
    %v973 = vor.u32 1.1754944e-38, %v972
    %v974 = vsel %vm971, %v973, %v969
    %v975 = vmul.f32 1.0, %v974
    %v976 = vmul.f32 %v823, %v885
    %v977 = vmul.f32 %v826, %v900
    %v978 = vmul.f32 %v829, %v915
    %v979 = vmul.f32 %v832, %v930
    %v980 = vmul.f32 %v835, %v945
    %v981 = vmul.f32 %v838, %v960
    %v982 = vmul.f32 %v841, %v975
    %v983 = vld [vmem:[%s11] sm:$0x1]
    %v985 = vperm.slane %v983, 0
    %v987 = vmul.f32 %v976, %v985
    %v988 = vmul.f32 %v977, %v985
    %v989 = vmul.f32 %v978, %v985
    %v990 = vmul.f32 %v979, %v985
    %v991 = vmul.f32 %v980, %v985
    %v992 = vmul.f32 %v981, %v985
    %v993 = vmul.f32 %v982, %v985
    %994 = vadd.xlane.f32.xlu0 %v987
    %v995 = vpop.xlane.xlu0 %994
    %996 = vadd.xlane.f32.xlu0 %v988
    %v997 = vpop.xlane.xlu0 %996
    %998 = vadd.xlane.f32.xlu0 %v989
    %v999 = vpop.xlane.xlu0 %998
    %1000 = vadd.xlane.f32.xlu0 %v990
    %v1001 = vpop.xlane.xlu0 %1000
    %1002 = vadd.xlane.f32.xlu0 %v991
    %v1003 = vpop.xlane.xlu0 %1002
    %1004 = vadd.xlane.f32.xlu0 %v992
    %v1005 = vpop.xlane.xlu0 %1004
    %1006 = vadd.xlane.f32.xlu0 %v993
    %v1007 = vpop.xlane.xlu0 %1006
    %v1008 = vmul.f32 %v995, 0.01
    %v1009 = vmul.f32 %v997, 0.01
    %v1010 = vmul.f32 %v999, 0.01
    %v1011 = vmul.f32 %v1001, 0.01
    %v1012 = vmul.f32 %v1003, 0.01
    %v1013 = vmul.f32 %v1005, 0.01
    %v1014 = vmul.f32 %v1007, 0.01
    %v1015 = vmul.f32 %v368, %v1008
    %v1016 = vmul.f32 %v383, %v1009
    %v1017 = vmul.f32 %v398, %v1010
    %v1018 = vmul.f32 %v413, %v1011
    %v1019 = vmul.f32 %v428, %v1012
    %v1020 = vmul.f32 %v443, %v1013
    %v1021 = vmul.f32 %v458, %v1014
    %p1022 = scmp.eq.s32.totalorder 0, 0
    // Predicated region
    $region62: #{tpu_custom_call.1} parent=1 // pred_check
      %p1023 = pneg %p1022
    $region63: #{tpu_custom_call.1} parent=1 // pred_check_branch
      %1025 = sbr.rel (%p1023) target = $region65
    $region64: #{tpu_custom_call.1} parent=1 // pred_region
      %1026 = vst.msk [vmem:[#allocation8] sm:$0xff] %vm234, 0.0
    $region65: #{tpu_custom_call.1} parent=1 // pred_fallthru
      _
    %v1027 = vld [vmem:[%s164] sm:$0xff]
    %v1028 = vld [vmem:[%s164 + $0x8] sm:$0xff]
    %v1029 = vld [vmem:[%s164 + $0x10] sm:$0xff]
    %v1030 = vld [vmem:[%s164 + $0x18] sm:$0xff]
    %v1031 = vld [vmem:[%s164 + $0x20] sm:$0xff]
    %v1032 = vld [vmem:[%s164 + $0x28] sm:$0xff]
    %v1033 = vld [vmem:[%s164 + $0x30] sm:$0xff]
    %v1034 = vlaneseq
    %v1035 = vand.u32 %v1034, 127
    %1036 = vset.pattern.permute.xlu0 0
    %1037 = vperm.xlu0 %1036, %v1027
    %v1038 = vpop.permute.xlu0 %1037
    %1039 = vset.pattern.permute.xlu0 0
    %1040 = vperm.xlu0 %1039, %v1028
    %v1041 = vpop.permute.xlu0 %1040
    %1042 = vset.pattern.permute.xlu0 0
    %1043 = vperm.xlu0 %1042, %v1029
    %v1044 = vpop.permute.xlu0 %1043
    %1045 = vset.pattern.permute.xlu0 0
    %1046 = vperm.xlu0 %1045, %v1030
    %v1047 = vpop.permute.xlu0 %1046
    %1048 = vset.pattern.permute.xlu0 0
    %1049 = vperm.xlu0 %1048, %v1031
    %v1050 = vpop.permute.xlu0 %1049
    %1051 = vset.pattern.permute.xlu0 0
    %1052 = vperm.xlu0 %1051, %v1032
    %v1053 = vpop.permute.xlu0 %1052
    %1054 = vset.pattern.permute.xlu0 0
    %1055 = vperm.xlu0 %1054, %v1033
    %v1056 = vpop.permute.xlu0 %1055
    %vm1057 = vcmp.eq.s32.totalorder %v1035, %v1038
    %vm1058 = vcmp.eq.s32.totalorder %v1035, %v1041
    %vm1059 = vcmp.eq.s32.totalorder %v1035, %v1044
    %vm1060 = vcmp.eq.s32.totalorder %v1035, %v1047
    %vm1061 = vcmp.eq.s32.totalorder %v1035, %v1050
    %vm1062 = vcmp.eq.s32.totalorder %v1035, %v1053
    %vm1063 = vcmp.eq.s32.totalorder %v1035, %v1056
    %v1064 = vsel %vm1057, 1, 0
    %v1065 = vsel %vm1058, 1, 0
    %v1066 = vsel %vm1059, 1, 0
    %v1067 = vsel %vm1060, 1, 0
    %v1068 = vsel %vm1061, 1, 0
    %v1069 = vsel %vm1062, 1, 0
    %v1070 = vsel %vm1063, 1, 0
    %v1071 = vcvt.s32.f32 %v1064
    %v1072 = vcvt.s32.f32 %v1065
    %v1073 = vcvt.s32.f32 %v1066
    %v1074 = vcvt.s32.f32 %v1067
    %v1075 = vcvt.s32.f32 %v1068
    %v1076 = vcvt.s32.f32 %v1069
    %v1077 = vcvt.s32.f32 %v1070
    %1078 = vxpose.xlu0.b32.start [1/16] %v1071, 128
    %1079 = vxpose.xlu0.b32.cont [2/16] %v1072, 128
    %1080 = vxpose.xlu0.b32.cont [3/16] %v1073, 128
    %1081 = vxpose.xlu0.b32.cont [4/16] %v1074, 128
    %1082 = vxpose.xlu0.b32.cont [5/16] %v1075, 128
    %1083 = vxpose.xlu0.b32.cont [6/16] %v1076, 128
    %1084 = vxpose.xlu0.b32.cont [7/16] %v1077, 128
    %1085 = vxpose.xlu0.b32.cont [8/16] 0.0, 128
    %1086 = vxpose.xlu0.b32.cont [9/16] 0.0, 128
    %1087 = vxpose.xlu0.b32.cont [10/16] 0.0, 128
    %1088 = vxpose.xlu0.b32.cont [11/16] 0.0, 128
    %1089 = vxpose.xlu0.b32.cont [12/16] 0.0, 128
    %1090 = vxpose.xlu0.b32.cont [13/16] 0.0, 128
    %1091 = vxpose.xlu0.b32.cont [14/16] 0.0, 128
    %1092 = vxpose.xlu0.b32.cont [15/16] 0.0, 128
    %1093 = vxpose.xlu0.b32.end [16/16] 0.0, 128
    %v1094 = vpop.trf.xlu0
    %v1095 = vpop.trf.xlu0
    %v1096 = vpop.trf.xlu0
    %v1097 = vpop.trf.xlu0
    %v1098 = vpop.trf.xlu0
    %v1099 = vpop.trf.xlu0
    %v1100 = vpop.trf.xlu0
    %v1101 = vpop.trf.xlu0
    %v1102 = vpop.trf.xlu0
    %v1103 = vpop.trf.xlu0
    %v1104 = vpop.trf.xlu0
    %v1105 = vpop.trf.xlu0
    %v1106 = vpop.trf.xlu0
    %v1107 = vpop.trf.xlu0
    %v1108 = vpop.trf.xlu0
    %v1109 = vpop.trf.xlu0
    %vm1110 = vcmask 457728
    %v1112 = vsel %vm1110, %v1094, 0
    %1114 = vmatpush.msra.mxu0 0.0
    %1115 = vmatpush.msra.mxu0 0.0
    %1116 = vmatpush.msra.mxu0 0.0
    %1117 = vmatpush.msra.mxu0 0.0
    %1118 = vmatpush.msra.mxu0 0.0
    %1119 = vmatpush.msra.mxu0 0.0
    %1120 = vmatpush.msra.mxu0 0.0
    %1121 = vmatpush.msra.mxu0 0.0
    %1122 = vmatpush.msra.mxu0 0.0
    %1123 = vmatpush.msra.mxu0 %v1021
    %1124 = vmatpush.msra.mxu0 %v1020
    %1125 = vmatpush.msra.mxu0 %v1019
    %1126 = vmatpush.msra.mxu0 %v1018
    %1127 = vmatpush.msra.mxu0 %v1017
    %1128 = vmatpush.msra.mxu0 %v1016
    %1129 = vmatpush.msra.mxu0 %v1015
    %1130 = vmatmul.f32.gmra.mxu0 %v1112
    %v1131 = vpop.f32.mrf.mxu0
    %v1132 = vadd.f32 0.0, %v1131
    %1133 = vdwg.mxu0
    %v1134 = vld [vmem:[#allocation8] sm:$0xff]
    %v1135 = vadd.f32 %v1134, %v1132
    %1136 = vst.msk [vmem:[#allocation8] sm:$0xff] %vm234, %v1135
    // Predicated region
    $region66: #{tpu_custom_call.1} parent=1 // pred_check
      _
    $region67: #{tpu_custom_call.1} parent=1 // pred_check_branch
      %1138 = sbr.rel (0) target = $region69
    $region68: #{tpu_custom_call.1} parent=1 // pred_region
      %1140 = vsyncadd [#allocation4], 0
      %s1142 = sshll.u32 [#allocation8], 4
      %s1143 = int_to_ptr.vmem [resolvable:$true] %s1142
      %s1144 = sshll.u32 %s12, 4
      %s1145 = int_to_ptr.hbm [resolvable:$true] %s1144
      %1147 = dma.vmem_to_hbm [thread:$0]  %s1143, 128, %s1145, [#allocation4]
    $region69: #{tpu_custom_call.1} parent=1 // pred_fallthru
      _
    // Predicated region
    $region70: #{tpu_custom_call.1} parent=1 // pred_check
      _
    $region71: #{tpu_custom_call.1} parent=1 // pred_check_branch
      %1149 = sbr.rel (0) target = $region73
    $region72: #{tpu_custom_call.1} parent=1 // pred_region
      %1151 = dma.done [#allocation4], 128
    $region73: #{tpu_custom_call.1} parent=1 // pred_fallthru
      _
    %1152 = vsyncpa [#allocation3], 1
    %1153 = vsyncpa [#allocation6], 1
    %1154 = vsyncpa [#allocation4], 1

</llo_original>
